<compile_context>
chip_gen: v7x
topology: tpu7x:2x2x1
jax: 0.10.0
libtpu: 0.0.40
codegen_flags: <defaults>
</compile_context>

<pallas_src>
import jax
import jax.numpy as jnp
from jax import lax
from jax.experimental import pallas as pl
from jax.experimental.pallas import tpu as pltpu


# ----------------------------------------------------------------------------
# tiling helpers
# ----------------------------------------------------------------------------
def _round_up(x, m):
    return ((x + m - 1) // m) * m


def _tile_rows(m, max_tm=512, min_steps=4):
    """Large row tiles, but keep a few grid steps so DMA overlaps compute."""
    tm = _round_up(pl.cdiv(m, min_steps), 8)
    return max(8, min(max_tm, tm))


def _vmem_limit(block_bytes):
    """Double-buffered block footprint + headroom, capped below v7x 64 MiB."""
    return int(min(max(4 * block_bytes, 8 << 20), 48 << 20))


# ----------------------------------------------------------------------------
# Pallas kernels
# ----------------------------------------------------------------------------
def _stem_kernel(x_ref, w1_ref, s1_ref, b1_ref, wd_ref, sd_ref, bd_ref,
                 h1_ref, id_ref):
    """conv1+bn1+relu and downsample(1x1 conv)+bnd, sharing one read of x."""
    x = x_ref[...]                                           # (tm, cin) bf16
    y1 = jnp.dot(x, w1_ref[...], preferred_element_type=jnp.float32)
    y1 = jnp.maximum(y1 * s1_ref[...] + b1_ref[...], 0.0)
    h1_ref[...] = y1.astype(h1_ref.dtype)                    # bf16 out
    yd = jnp.dot(x, wd_ref[...], preferred_element_type=jnp.float32)
    id_ref[...] = (yd * sd_ref[...] + bd_ref[...]).astype(id_ref.dtype)


def _fused_conv_kernel(p_ref, w2_ref, s2_ref, b2_ref, w3_ref, s3_ref, b3_ref,
                       r_ref, o_ref):
    """conv2 (one K=taps*Cb matmul) + bn2 + relu + conv3 + bn3 + residual."""
    h = jnp.dot(p_ref[...], w2_ref[...], preferred_element_type=jnp.float32)
    h = jnp.maximum(h * s2_ref[...] + b2_ref[...], 0.0)      # bn2 + relu_
    y = jnp.dot(h.astype(w3_ref.dtype), w3_ref[...],
                preferred_element_type=jnp.float32)          # conv3
    y = y * s3_ref[...] + b3_ref[...] + r_ref[...]           # bn3 + residual
    o_ref[...] = y.astype(o_ref.dtype)


# ----------------------------------------------------------------------------
# Pallas wrappers
# ----------------------------------------------------------------------------
def stem(x_nhwc, params):
    """Fused conv1/bn1/relu + downsample-conv/bnd over a single read of x."""
    n, h, w, cin = x_nhwc.shape
    cb = params["w1"].shape[1]
    cout = params["wd"].shape[1]
    s1, b1 = params["bn1"]
    sd, bd = params["bnd"]

    m = n * h * w
    tm = _tile_rows(m)
    mp = _round_up(m, tm)
    xm = x_nhwc.reshape(m, cin).astype(jnp.bfloat16)
    if mp != m:
        xm = jnp.pad(xm, ((0, mp - m), (0, 0)))

    blk = tm * (2 * cin + 2 * cb + 4 * cout) + 2 * cin * (cb + cout) \
        + 8 * (cb + cout)

    h1, idn = pl.pallas_call(
        _stem_kernel,
        out_shape=(jax.ShapeDtypeStruct((mp, cb), jnp.bfloat16),
                   jax.ShapeDtypeStruct((mp, cout), jnp.float32)),
        grid_spec=pltpu.PrefetchScalarGridSpec(
            num_scalar_prefetch=0,
            grid=(mp // tm,),
            in_specs=[
                pl.BlockSpec((tm, cin), lambda i: (i, 0)),
                pl.BlockSpec((cin, cb), lambda i: (0, 0)),
                pl.BlockSpec((1, cb), lambda i: (0, 0)),
                pl.BlockSpec((1, cb), lambda i: (0, 0)),
                pl.BlockSpec((cin, cout), lambda i: (0, 0)),
                pl.BlockSpec((1, cout), lambda i: (0, 0)),
                pl.BlockSpec((1, cout), lambda i: (0, 0)),
            ],
            out_specs=[pl.BlockSpec((tm, cb), lambda i: (i, 0)),
                       pl.BlockSpec((tm, cout), lambda i: (i, 0))],
        ),
        compiler_params=pltpu.CompilerParams(
            dimension_semantics=("parallel",),
            vmem_limit_bytes=_vmem_limit(blk)),
    )(xm, params["w1"].astype(jnp.bfloat16),
      s1.reshape(1, cb), b1.reshape(1, cb),
      params["wd"].astype(jnp.bfloat16),
      sd.reshape(1, cout), bd.reshape(1, cout))

    return (h1[:m].reshape(n, h, w, cb),
            idn[:m].reshape(n, h, w, cout))


def fused_conv2_conv3(patches, w2cat, bn2, w3, bn3, residual):
    """One pallas_call: conv2(as single matmul)+bn2+relu+conv3+bn3+residual."""
    m, k = patches.shape
    cb, cout = w3.shape
    s2, b2 = bn2
    s3, b3 = bn3

    tm = _tile_rows(m)
    mp = _round_up(m, tm)
    if mp != m:
        patches = jnp.pad(patches, ((0, mp - m), (0, 0)))
        residual = jnp.pad(residual, ((0, mp - m), (0, 0)))

    blk = tm * (2 * k + 8 * cout) + 2 * k * cb + 2 * cb * cout \
        + 8 * (cb + cout)

    out = pl.pallas_call(
        _fused_conv_kernel,
        out_shape=jax.ShapeDtypeStruct((mp, cout), jnp.float32),
        grid_spec=pltpu.PrefetchScalarGridSpec(
            num_scalar_prefetch=0,
            grid=(mp // tm,),
            in_specs=[
                pl.BlockSpec((tm, k), lambda i: (i, 0)),      # patches
                pl.BlockSpec((k, cb), lambda i: (0, 0)),      # conv2 weight
                pl.BlockSpec((1, cb), lambda i: (0, 0)),      # bn2 scale
                pl.BlockSpec((1, cb), lambda i: (0, 0)),      # bn2 bias
                pl.BlockSpec((cb, cout), lambda i: (0, 0)),   # conv3 weight
                pl.BlockSpec((1, cout), lambda i: (0, 0)),    # bn3 scale
                pl.BlockSpec((1, cout), lambda i: (0, 0)),    # bn3 bias
                pl.BlockSpec((tm, cout), lambda i: (i, 0)),   # residual
            ],
            out_specs=pl.BlockSpec((tm, cout), lambda i: (i, 0)),
        ),
        compiler_params=pltpu.CompilerParams(
            dimension_semantics=("parallel",),
            vmem_limit_bytes=_vmem_limit(blk)),
    )(patches.astype(jnp.bfloat16), w2cat.astype(jnp.bfloat16),
      s2.reshape(1, cb), b2.reshape(1, cb),
      w3.astype(jnp.bfloat16),
      s3.reshape(1, cout), b3.reshape(1, cout),
      residual.astype(jnp.float32))
    return out[:m]


# ----------------------------------------------------------------------------
# glue: 3x3 tap extraction (lane-concatenated, single (M, 9*Cb) slab)
# ----------------------------------------------------------------------------
# TODO(synk): move tap construction inside the kernel (pl.Element offsets into
# the padded input) to avoid the remaining ~9x conv2-input HBM amplification.
def _taps_concat(x_pad, ho, wo, sh, sw):
    n, _, _, c = x_pad.shape
    taps = []
    for kh in range(3):
        for kw in range(3):
            v = lax.slice(
                x_pad,
                (0, kh, kw, 0),
                (n, kh + (ho - 1) * sh + 1, kw + (wo - 1) * sw + 1, c),
                (1, sh, sw, 1))
            taps.append(v.reshape(n * ho * wo, c))
    return jnp.concatenate(taps, axis=1)          # (M, 9*c), tap-major


# ----------------------------------------------------------------------------
# FeatureResize (plain-JAX glue on the residual path)
# ----------------------------------------------------------------------------
def feature_resize(x_nhwc, target_hw):
    n, h, w, c = x_nhwc.shape
    th, tw = target_hw
    if (h, w) == (th, tw):
        return x_nhwc
    if h < th or w < tw:
        # F.interpolate(mode='nearest'): src = floor(dst * in / out)
        ih = (jnp.arange(th) * h // th).astype(jnp.int32)
        iw = (jnp.arange(tw) * w // tw).astype(jnp.int32)
        return x_nhwc[:, ih][:, :, iw]
    if h % th == 0 and w % tw == 0:
        # adaptive_avg_pool2d with even bins == mean over fixed windows
        return x_nhwc.reshape(n, th, h // th, tw, w // tw, c).mean(axis=(2, 4))
    # TODO(synk): uneven adaptive_avg_pool2d kept as a small python loop
    rows = []
    for i in range(th):
        h0, h1 = (i * h) // th, -(-((i + 1) * h) // th)
        cols = []
        for j in range(tw):
            w0, w1 = (j * w) // tw, -(-((j + 1) * w) // tw)
            cols.append(jnp.mean(x_nhwc[:, h0:h1, w0:w1, :], axis=(1, 2)))
        rows.append(jnp.stack(cols, axis=1))
    return jnp.stack(rows, axis=1)


# ----------------------------------------------------------------------------
# Parameters (deterministic, synthetic)
# ----------------------------------------------------------------------------
def _fold_bn(gamma, beta, mean, var, eps=1e-5):
    scale = gamma / jnp.sqrt(var + eps)
    return scale, beta - mean * scale


def init_params(key, cin, cb, cout):
    ks = jax.random.split(key, 8)

    def norm_params(k, c):
        k1, k2, k3, k4 = jax.random.split(k, 4)
        gamma = 1.0 + 0.1 * jax.random.normal(k1, (c,), jnp.float32)
        beta = 0.1 * jax.random.normal(k2, (c,), jnp.float32)
        mean = 0.1 * jax.random.normal(k3, (c,), jnp.float32)
        var = jnp.abs(jax.random.normal(k4, (c,), jnp.float32)) + 0.5
        return _fold_bn(gamma, beta, mean, var)

    p = {}
    p["w1"] = 0.1 * jax.random.normal(ks[0], (cin, cb), jnp.float32)       # conv1 1x1 (IO)
    p["bn1"] = norm_params(ks[1], cb)
    p["w2"] = 0.1 * jax.random.normal(ks[2], (3, 3, cb, cb), jnp.float32)  # conv2 3x3 (HWIO)
    p["bn2"] = norm_params(ks[3], cb)
    p["w3"] = 0.1 * jax.random.normal(ks[4], (cb, cout), jnp.float32)      # conv3 1x1 (IO)
    p["bn3"] = norm_params(ks[5], cout)
    p["wd"] = 0.1 * jax.random.normal(ks[6], (cin, cout), jnp.float32)     # downsample 1x1
    p["bnd"] = norm_params(ks[7], cout)
    return p


# ----------------------------------------------------------------------------
# StriderBlock forward (Pallas)
# ----------------------------------------------------------------------------
def strider_block_forward(x_nchw, params, stride_options, stride_choice):
    x = jnp.transpose(x_nchw, (0, 2, 3, 1))          # NCHW -> NHWC
    n, h, w, _ = x.shape
    cb = params["w1"].shape[1]
    cout = params["w3"].shape[1]
    w2 = params["w2"]                                 # (3,3,cb,cb) HWIO
    w3 = params["w3"]
    bn2, bn3 = params["bn2"], params["bn3"]

    # conv1+bn1+relu and the downsample identity branch, one read of x
    h1, identity = stem(x, params)                    # h1 bf16, identity f32

    use_tconv, (sh, sw) = stride_options[stride_choice]
    if use_tconv and (sh, sw) == (1, 1):
        use_tconv = False   # stride-1 tconv(pad=1, out_pad=0) == stride-1 conv

    if not use_tconv:
        # ---- F.conv2d(W, stride=s, padding=1) --------------------------------
        ho, wo = (h - 1) // sh + 1, (w - 1) // sw + 1
        xp = jnp.pad(h1, ((0, 0), (1, 1), (1, 1), (0, 0)))
        patches = _taps_concat(xp, ho, wo, sh, sw)            # (M, 9*cb) bf16
        res = feature_resize(identity, (ho, wo)).reshape(n * ho * wo, cout)
        out = fused_conv2_conv3(patches, w2.reshape(9 * cb, cb),
                                bn2, w3, bn3, res)
        out = out.reshape(n, ho, wo, cout)

    elif (sh, sw) == (2, 2):
        # ---- stride-2 transposed conv via sub-pixel decomposition ------------
        # out[:, 2p+a, 2q+b] only sees h1[p(+dh), q(+dw)] through a fixed tap
        # subset; the 4x zero-dilated tensor is never built, and the nearest-
        # upsampled residual at (2p+a, 2q+b) is just identity[p, q].
        ho, wo = 2 * h, 2 * w
        h1p = jnp.pad(h1, ((0, 0), (0, 1), (0, 1), (0, 0)))   # zero at high edge
        res = identity.reshape(n * h * w, cout)
        A = {0: ((1, 0),), 1: ((0, 0), (2, 1))}               # (kernel idx, shift)
        sub_rows = []
        for a in range(2):
            row = []
            for b in range(2):
                taps = [(kh, kw, dh, dw)
                        for (kh, dh) in A[a] for (kw, dw) in A[b]]
                pat = jnp.concatenate(
                    [h1p[:, dh:dh + h, dw:dw + w, :].reshape(n * h * w, cb)
                     for (kh, kw, dh, dw) in taps], axis=1)
                wcat = jnp.concatenate(
                    [w2[kh, kw] for (kh, kw, dh, dw) in taps], axis=0)
                o_ab = fused_conv2_conv3(pat, wcat, bn2, w3, bn3, res)
                row.append(o_ab.reshape(n, h, w, cout))
            sub_rows.append(jnp.stack(row, axis=0))
        out = jnp.stack(sub_rows, axis=0)                     # (2,2,n,h,w,c) [a,b]
        out = out.transpose(2, 3, 0, 4, 1, 5).reshape(n, ho, wo, cout)

    else:
        # ---- general-stride transposed conv fallback (zero-dilated input) ----
        # TODO(synk): sub-pixel decomposition for general strides.
        ho, wo = h * sh, w * sw
        z = lax.pad(h1, jnp.array(0, h1.dtype),
                    [(0, 0, 0), (1, sh, sh - 1), (1, sw, sw - 1), (0, 0, 0)])
        patches = _taps_concat(z, ho, wo, 1, 1)
        res = feature_resize(identity, (ho, wo)).reshape(n * ho * wo, cout)
        out = fused_conv2_conv3(patches, w2.reshape(9 * cb, cb),
                                bn2, w3, bn3, res)
        out = out.reshape(n, ho, wo, cout)

    return jnp.transpose(out, (0, 3, 1, 2)).astype(x_nchw.dtype)  # NHWC -> NCHW


# ----------------------------------------------------------------------------
# Pure-JAX reference (lax convs, f32) for validation
# ----------------------------------------------------------------------------
def strider_block_reference(x_nchw, params, stride_options, stride_choice):
    x = jnp.transpose(x_nchw, (0, 2, 3, 1))
    dn = ("NHWC", "HWIO", "NHWC")

    def pw(t, w):
        return lax.conv_general_dilated(
            t, w.reshape(1, 1, *w.shape), (1, 1), [(0, 0), (0, 0)],
            dimension_numbers=dn)

    s1, b1 = params["bn1"]
    h1 = jax.nn.relu(pw(x, params["w1"]) * s1 + b1)

    use_tconv, (sh, sw) = stride_options[stride_choice]
    if use_tconv:
        h2 = lax.conv_general_dilated(
            h1, params["w2"], (1, 1), [(1, sh), (1, sw)],
            lhs_dilation=(sh, sw), dimension_numbers=dn)
    else:
        h2 = lax.conv_general_dilated(
            h1, params["w2"], (sh, sw), [(1, 1), (1, 1)],
            dimension_numbers=dn)
    s2, b2 = params["bn2"]
    h2 = jax.nn.relu(h2 * s2 + b2)

    sd, bd = params["bnd"]
    identity = pw(x, params["wd"]) * sd + bd
    identity = feature_resize(identity, (h2.shape[1], h2.shape[2]))

    s3, b3 = params["bn3"]
    out = pw(h2, params["w3"]) * s3 + b3 + identity
    return jnp.transpose(out, (0, 3, 1, 2))


if __name__ == "__main__":
    key = jax.random.PRNGKey(0)
    kx, kp = jax.random.split(key)

    N, CIN, CB, COUT, H, W = 2, 8, 8, 16, 16, 16
    x = jax.random.normal(kx, (N, CIN, H, W), jnp.float32)  # PyTorch NCHW
    params = init_params(kp, CIN, CB, COUT)

    # (use_tconv, stride): identity / downsample-by-2 / transposed-upsample-by-2
    stride_options = ((False, (1, 1)), (False, (2, 2)), (True, (2, 2)))

    fwd = jax.jit(strider_block_forward, static_argnums=(2, 3))

    ok = True
    for choice in range(len(stride_options)):
        out = jax.block_until_ready(fwd(x, params, stride_options, choice))
        ref = strider_block_reference(x, params, stride_options, choice)
        # bf16 matmul operands vs f32 reference -> ~1e-2 tolerance
        if not bool(jnp.allclose(out, ref, atol=2e-2, rtol=2e-2)):
            ok = False

    if not ok:
        raise SystemExit("Pallas output mismatch vs reference")
    print("KERNEL_OK")
</pallas_src>

<mosaic_0001>
module attributes {stable_mosaic.version = 11 : i64} {
  func.func @_stem_kernel(%arg0: i32, %arg1: memref<128x8xbf16, #tpu.memory_space<vmem>>, %arg2: memref<8x8xbf16, #tpu.memory_space<vmem>>, %arg3: memref<1x8xf32, #tpu.memory_space<vmem>>, %arg4: memref<1x8xf32, #tpu.memory_space<vmem>>, %arg5: memref<8x16xbf16, #tpu.memory_space<vmem>>, %arg6: memref<1x16xf32, #tpu.memory_space<vmem>>, %arg7: memref<1x16xf32, #tpu.memory_space<vmem>>, %arg8: memref<128x8xbf16, #tpu.memory_space<vmem>>, %arg9: memref<128x16xf32, #tpu.memory_space<vmem>>) attributes {dimension_semantics = [#tpu.dimension_semantics<parallel>], iteration_bounds = array<i64: 4>, scalar_prefetch = 0 : i64, scratch_operands = 0 : i64, tpu.core_type = #tpu.core_type<tc>, window_params = [{transform_indices = @transform_0, window_bounds = array<i64: 128, 8>}, {pipeline_mode = #tpu.pipeline_mode<synchronous>, transform_indices = @transform_1, window_bounds = array<i64: 8, 8>}, {pipeline_mode = #tpu.pipeline_mode<synchronous>, transform_indices = @transform_2, window_bounds = array<i64: 1, 8>}, {pipeline_mode = #tpu.pipeline_mode<synchronous>, transform_indices = @transform_3, window_bounds = array<i64: 1, 8>}, {pipeline_mode = #tpu.pipeline_mode<synchronous>, transform_indices = @transform_4, window_bounds = array<i64: 8, 16>}, {pipeline_mode = #tpu.pipeline_mode<synchronous>, transform_indices = @transform_5, window_bounds = array<i64: 1, 16>}, {pipeline_mode = #tpu.pipeline_mode<synchronous>, transform_indices = @transform_6, window_bounds = array<i64: 1, 16>}, {transform_indices = @transform_7, window_bounds = array<i64: 128, 8>}, {transform_indices = @transform_8, window_bounds = array<i64: 128, 16>}]} {
    %c0 = arith.constant 0 : index
    %c0_0 = arith.constant 0 : index
    %0 = vector.load %arg1[%c0, %c0_0] : memref<128x8xbf16, #tpu.memory_space<vmem>>, vector<128x8xbf16>
    %c0_1 = arith.constant 0 : index
    %c0_2 = arith.constant 0 : index
    %1 = vector.load %arg2[%c0_1, %c0_2] : memref<8x8xbf16, #tpu.memory_space<vmem>>, vector<8x8xbf16>
    %cst = arith.constant dense<0.000000e+00> : vector<128x8xf32>
    %2 = tpu.matmul %0, %1, %cst {dimension_numbers = #tpu.dot_dimension_numbers<[1], [0], [0], [1], [0, 0, 1, 1], [], []>} : vector<128x8xbf16>, vector<8x8xbf16>, vector<128x8xf32> -> vector<128x8xf32>
    %c0_3 = arith.constant 0 : index
    %c0_4 = arith.constant 0 : index
    %3 = vector.load %arg3[%c0_3, %c0_4] : memref<1x8xf32, #tpu.memory_space<vmem>>, vector<1x8xf32>
    %4 = vector.broadcast %3 : vector<1x8xf32> to vector<128x8xf32>
    %5 = arith.mulf %2, %4 : vector<128x8xf32>
    %c0_5 = arith.constant 0 : index
    %c0_6 = arith.constant 0 : index
    %6 = vector.load %arg4[%c0_5, %c0_6] : memref<1x8xf32, #tpu.memory_space<vmem>>, vector<1x8xf32>
    %7 = vector.broadcast %6 : vector<1x8xf32> to vector<128x8xf32>
    %8 = arith.addf %5, %7 : vector<128x8xf32>
    %cst_7 = arith.constant 0.000000e+00 : f32
    %9 = vector.broadcast %cst_7 : f32 to vector<128x8xf32>
    %10 = arith.maximumf %8, %9 : vector<128x8xf32>
    %11 = arith.truncf %10 : vector<128x8xf32> to vector<128x8xbf16>
    %c0_8 = arith.constant 0 : index
    %c0_9 = arith.constant 0 : index
    %12 = vector.load %arg8[%c0_8, %c0_9] : memref<128x8xbf16, #tpu.memory_space<vmem>>, vector<128x8xbf16>
    tpu.vector_store %arg8[%c0_8, %c0_9], %11 {strides = array<i32>} : memref<128x8xbf16, #tpu.memory_space<vmem>>, vector<128x8xbf16>,
    %c0_10 = arith.constant 0 : index
    %c0_11 = arith.constant 0 : index
    %13 = vector.load %arg5[%c0_10, %c0_11] : memref<8x16xbf16, #tpu.memory_space<vmem>>, vector<8x16xbf16>
    %cst_12 = arith.constant dense<0.000000e+00> : vector<128x16xf32>
    %14 = tpu.matmul %0, %13, %cst_12 {dimension_numbers = #tpu.dot_dimension_numbers<[1], [0], [0], [1], [0, 0, 1, 1], [], []>} : vector<128x8xbf16>, vector<8x16xbf16>, vector<128x16xf32> -> vector<128x16xf32>
    %c0_13 = arith.constant 0 : index
    %c0_14 = arith.constant 0 : index
    %15 = vector.load %arg6[%c0_13, %c0_14] : memref<1x16xf32, #tpu.memory_space<vmem>>, vector<1x16xf32>
    %16 = vector.broadcast %15 : vector<1x16xf32> to vector<128x16xf32>
    %17 = arith.mulf %14, %16 : vector<128x16xf32>
    %c0_15 = arith.constant 0 : index
    %c0_16 = arith.constant 0 : index
    %18 = vector.load %arg7[%c0_15, %c0_16] : memref<1x16xf32, #tpu.memory_space<vmem>>, vector<1x16xf32>
    %19 = vector.broadcast %18 : vector<1x16xf32> to vector<128x16xf32>
    %20 = arith.addf %17, %19 : vector<128x16xf32>
    %c0_17 = arith.constant 0 : index
    %c0_18 = arith.constant 0 : index
    %21 = vector.load %arg9[%c0_17, %c0_18] : memref<128x16xf32, #tpu.memory_space<vmem>>, vector<128x16xf32>
    tpu.vector_store %arg9[%c0_17, %c0_18], %20 {strides = array<i32>} : memref<128x16xf32, #tpu.memory_space<vmem>>, vector<128x16xf32>,
    return
  }
  func.func @transform_0(%arg0: i32) -> (i32, i32) {
    %c0_i32 = arith.constant 0 : i32
    %c0_i32_0 = arith.constant 0 : i32
    return %arg0, %c0_i32 : i32, i32
  }
  func.func @transform_1(%arg0: i32) -> (i32, i32) {
    %c0_i32 = arith.constant 0 : i32
    %c0_i32_0 = arith.constant 0 : i32
    %c0_i32_1 = arith.constant 0 : i32
    return %c0_i32, %c0_i32_0 : i32, i32
  }
  func.func @transform_2(%arg0: i32) -> (i32, i32) {
    %c0_i32 = arith.constant 0 : i32
    %c0_i32_0 = arith.constant 0 : i32
    %c0_i32_1 = arith.constant 0 : i32
    return %c0_i32, %c0_i32_0 : i32, i32
  }
  func.func @transform_3(%arg0: i32) -> (i32, i32) {
    %c0_i32 = arith.constant 0 : i32
    %c0_i32_0 = arith.constant 0 : i32
    %c0_i32_1 = arith.constant 0 : i32
    return %c0_i32, %c0_i32_0 : i32, i32
  }
  func.func @transform_4(%arg0: i32) -> (i32, i32) {
    %c0_i32 = arith.constant 0 : i32
    %c0_i32_0 = arith.constant 0 : i32
    %c0_i32_1 = arith.constant 0 : i32
    return %c0_i32, %c0_i32_0 : i32, i32
  }
  func.func @transform_5(%arg0: i32) -> (i32, i32) {
    %c0_i32 = arith.constant 0 : i32
    %c0_i32_0 = arith.constant 0 : i32
    %c0_i32_1 = arith.constant 0 : i32
    return %c0_i32, %c0_i32_0 : i32, i32
  }
  func.func @transform_6(%arg0: i32) -> (i32, i32) {
    %c0_i32 = arith.constant 0 : i32
    %c0_i32_0 = arith.constant 0 : i32
    %c0_i32_1 = arith.constant 0 : i32
    return %c0_i32, %c0_i32_0 : i32, i32
  }
  func.func @transform_7(%arg0: i32) -> (i32, i32) {
    %c0_i32 = arith.constant 0 : i32
    %c0_i32_0 = arith.constant 0 : i32
    return %arg0, %c0_i32 : i32, i32
  }
  func.func @transform_8(%arg0: i32) -> (i32, i32) {
    %c0_i32 = arith.constant 0 : i32
    %c0_i32_0 = arith.constant 0 : i32
    return %arg0, %c0_i32 : i32, i32
  }
}

module attributes {stable_mosaic.version = 11 : i64} {
  func.func @_fused_conv_kernel(%arg0: i32, %arg1: memref<128x72xbf16, #tpu.memory_space<vmem>>, %arg2: memref<72x8xbf16, #tpu.memory_space<vmem>>, %arg3: memref<1x8xf32, #tpu.memory_space<vmem>>, %arg4: memref<1x8xf32, #tpu.memory_space<vmem>>, %arg5: memref<8x16xbf16, #tpu.memory_space<vmem>>, %arg6: memref<1x16xf32, #tpu.memory_space<vmem>>, %arg7: memref<1x16xf32, #tpu.memory_space<vmem>>, %arg8: memref<128x16xf32, #tpu.memory_space<vmem>>, %arg9: memref<128x16xf32, #tpu.memory_space<vmem>>) attributes {dimension_semantics = [#tpu.dimension_semantics<parallel>], iteration_bounds = array<i64: 4>, scalar_prefetch = 0 : i64, scratch_operands = 0 : i64, tpu.core_type = #tpu.core_type<tc>, window_params = [{transform_indices = @transform_0, window_bounds = array<i64: 128, 72>}, {pipeline_mode = #tpu.pipeline_mode<synchronous>, transform_indices = @transform_1, window_bounds = array<i64: 72, 8>}, {pipeline_mode = #tpu.pipeline_mode<synchronous>, transform_indices = @transform_2, window_bounds = array<i64: 1, 8>}, {pipeline_mode = #tpu.pipeline_mode<synchronous>, transform_indices = @transform_3, window_bounds = array<i64: 1, 8>}, {pipeline_mode = #tpu.pipeline_mode<synchronous>, transform_indices = @transform_4, window_bounds = array<i64: 8, 16>}, {pipeline_mode = #tpu.pipeline_mode<synchronous>, transform_indices = @transform_5, window_bounds = array<i64: 1, 16>}, {pipeline_mode = #tpu.pipeline_mode<synchronous>, transform_indices = @transform_6, window_bounds = array<i64: 1, 16>}, {transform_indices = @transform_7, window_bounds = array<i64: 128, 16>}, {transform_indices = @transform_8, window_bounds = array<i64: 128, 16>}]} {
    %c0 = arith.constant 0 : index
    %c0_0 = arith.constant 0 : index
    %0 = vector.load %arg1[%c0, %c0_0] : memref<128x72xbf16, #tpu.memory_space<vmem>>, vector<128x72xbf16>
    %c0_1 = arith.constant 0 : index
    %c0_2 = arith.constant 0 : index
    %1 = vector.load %arg2[%c0_1, %c0_2] : memref<72x8xbf16, #tpu.memory_space<vmem>>, vector<72x8xbf16>
    %cst = arith.constant dense<0.000000e+00> : vector<128x8xf32>
    %2 = tpu.matmul %0, %1, %cst {dimension_numbers = #tpu.dot_dimension_numbers<[1], [0], [0], [1], [0, 0, 1, 1], [], []>} : vector<128x72xbf16>, vector<72x8xbf16>, vector<128x8xf32> -> vector<128x8xf32>
    %c0_3 = arith.constant 0 : index
    %c0_4 = arith.constant 0 : index
    %3 = vector.load %arg3[%c0_3, %c0_4] : memref<1x8xf32, #tpu.memory_space<vmem>>, vector<1x8xf32>
    %4 = vector.broadcast %3 : vector<1x8xf32> to vector<128x8xf32>
    %5 = arith.mulf %2, %4 : vector<128x8xf32>
    %c0_5 = arith.constant 0 : index
    %c0_6 = arith.constant 0 : index
    %6 = vector.load %arg4[%c0_5, %c0_6] : memref<1x8xf32, #tpu.memory_space<vmem>>, vector<1x8xf32>
    %7 = vector.broadcast %6 : vector<1x8xf32> to vector<128x8xf32>
    %8 = arith.addf %5, %7 : vector<128x8xf32>
    %cst_7 = arith.constant 0.000000e+00 : f32
    %9 = vector.broadcast %cst_7 : f32 to vector<128x8xf32>
    %10 = arith.maximumf %8, %9 : vector<128x8xf32>
    %11 = arith.truncf %10 : vector<128x8xf32> to vector<128x8xbf16>
    %c0_8 = arith.constant 0 : index
    %c0_9 = arith.constant 0 : index
    %12 = vector.load %arg5[%c0_8, %c0_9] : memref<8x16xbf16, #tpu.memory_space<vmem>>, vector<8x16xbf16>
    %cst_10 = arith.constant dense<0.000000e+00> : vector<128x16xf32>
    %13 = tpu.matmul %11, %12, %cst_10 {dimension_numbers = #tpu.dot_dimension_numbers<[1], [0], [0], [1], [0, 0, 1, 1], [], []>} : vector<128x8xbf16>, vector<8x16xbf16>, vector<128x16xf32> -> vector<128x16xf32>
    %c0_11 = arith.constant 0 : index
    %c0_12 = arith.constant 0 : index
    %14 = vector.load %arg6[%c0_11, %c0_12] : memref<1x16xf32, #tpu.memory_space<vmem>>, vector<1x16xf32>
    %15 = vector.broadcast %14 : vector<1x16xf32> to vector<128x16xf32>
    %16 = arith.mulf %13, %15 : vector<128x16xf32>
    %c0_13 = arith.constant 0 : index
    %c0_14 = arith.constant 0 : index
    %17 = vector.load %arg7[%c0_13, %c0_14] : memref<1x16xf32, #tpu.memory_space<vmem>>, vector<1x16xf32>
    %18 = vector.broadcast %17 : vector<1x16xf32> to vector<128x16xf32>
    %19 = arith.addf %16, %18 : vector<128x16xf32>
    %c0_15 = arith.constant 0 : index
    %c0_16 = arith.constant 0 : index
    %20 = vector.load %arg8[%c0_15, %c0_16] : memref<128x16xf32, #tpu.memory_space<vmem>>, vector<128x16xf32>
    %21 = arith.addf %19, %20 : vector<128x16xf32>
    %c0_17 = arith.constant 0 : index
    %c0_18 = arith.constant 0 : index
    %22 = vector.load %arg9[%c0_17, %c0_18] : memref<128x16xf32, #tpu.memory_space<vmem>>, vector<128x16xf32>
    tpu.vector_store %arg9[%c0_17, %c0_18], %21 {strides = array<i32>} : memref<128x16xf32, #tpu.memory_space<vmem>>, vector<128x16xf32>,
    return
  }
  func.func @transform_0(%arg0: i32) -> (i32, i32) {
    %c0_i32 = arith.constant 0 : i32
    %c0_i32_0 = arith.constant 0 : i32
    return %arg0, %c0_i32 : i32, i32
  }
  func.func @transform_1(%arg0: i32) -> (i32, i32) {
    %c0_i32 = arith.constant 0 : i32
    %c0_i32_0 = arith.constant 0 : i32
    %c0_i32_1 = arith.constant 0 : i32
    return %c0_i32, %c0_i32_0 : i32, i32
  }
  func.func @transform_2(%arg0: i32) -> (i32, i32) {
    %c0_i32 = arith.constant 0 : i32
    %c0_i32_0 = arith.constant 0 : i32
    %c0_i32_1 = arith.constant 0 : i32
    return %c0_i32, %c0_i32_0 : i32, i32
  }
  func.func @transform_3(%arg0: i32) -> (i32, i32) {
    %c0_i32 = arith.constant 0 : i32
    %c0_i32_0 = arith.constant 0 : i32
    %c0_i32_1 = arith.constant 0 : i32
    return %c0_i32, %c0_i32_0 : i32, i32
  }
  func.func @transform_4(%arg0: i32) -> (i32, i32) {
    %c0_i32 = arith.constant 0 : i32
    %c0_i32_0 = arith.constant 0 : i32
    %c0_i32_1 = arith.constant 0 : i32
    return %c0_i32, %c0_i32_0 : i32, i32
  }
  func.func @transform_5(%arg0: i32) -> (i32, i32) {
    %c0_i32 = arith.constant 0 : i32
    %c0_i32_0 = arith.constant 0 : i32
    %c0_i32_1 = arith.constant 0 : i32
    return %c0_i32, %c0_i32_0 : i32, i32
  }
  func.func @transform_6(%arg0: i32) -> (i32, i32) {
    %c0_i32 = arith.constant 0 : i32
    %c0_i32_0 = arith.constant 0 : i32
    %c0_i32_1 = arith.constant 0 : i32
    return %c0_i32, %c0_i32_0 : i32, i32
  }
  func.func @transform_7(%arg0: i32) -> (i32, i32) {
    %c0_i32 = arith.constant 0 : i32
    %c0_i32_0 = arith.constant 0 : i32
    return %arg0, %c0_i32 : i32, i32
  }
  func.func @transform_8(%arg0: i32) -> (i32, i32) {
    %c0_i32 = arith.constant 0 : i32
    %c0_i32_0 = arith.constant 0 : i32
    return %arg0, %c0_i32 : i32, i32
  }
}

</mosaic_0001>

<llo_original>
// kernel: strider_block_forward.3
$region0: #{strider_block_forward.3}
  #allocation0 [shape = 'u32[]', space=smem, size = 0x4, offset = 0x4, fixed_abs, tag = 'smem constant byte address 0x4 - core index']
  #allocation1 [shape = 'u32[144,128]{1,0:T(1,128)}', space=vmem, size = 0x12000, scoped, tag = 'internal scratch']
  %s0 = inlined_call_operand.vmem [shape: bf16[512,72], index: 0, kind: input, shape index: {}]
  %s1 = inlined_call_operand.vmem [shape: bf16[72,8], index: 1, kind: input, shape index: {}]
  %s2 = inlined_call_operand.vmem [shape: f32[1,8], index: 2, kind: input, shape index: {}]
  %s3 = inlined_call_operand.vmem [shape: f32[1,8], index: 3, kind: input, shape index: {}]
  %s4 = inlined_call_operand.vmem [shape: bf16[8,16], index: 4, kind: input, shape index: {}]
  %s5 = inlined_call_operand.vmem [shape: f32[1,16], index: 5, kind: input, shape index: {}]
  %s6 = inlined_call_operand.vmem [shape: f32[1,16], index: 6, kind: input, shape index: {}]
  %s7 = inlined_call_operand.vmem [shape: f32[512,16], index: 7, kind: input, shape index: {}]
  %s8 = inlined_call_operand.vmem [shape: f32[512,16], index: 8, kind: output, shape index: {}]
  %s9 = sld [smem:[#allocation0]]
  $region65: #{strider_block_forward.3} parent=0
    _
  %s11 = ssub.s32 1, %s9
  %s12 = scalar_select 0, %s11, %s9
  loop: start=0, step=1, limit=6
  $region2: #{strider_block_forward.3} parent=0 // loop_pre_header
    _
  $region3: #{strider_block_forward.3} parent=0 // loop_header
    %s14 = sphi 0, %s18
    %p15 = scmp.ge.s32.totalorder %s14, 6
    %s24 = sphi 0, %s26
    %s27 = sphi 0, %s24
    %s28 = sphi 0, %s27
    %s44 = sphi 0, %s28
    %s48 = sphi 0, %s48
    %s50 = sphi 0, %s48
    %s51 = sphi 0, %s50
    %s65 = sphi 0, %s51
    %s69 = sphi 0, %s69
    %s71 = sphi 0, %s69
    %s72 = sphi 0, %s71
    %s86 = sphi 0, %s72
    %s90 = sphi 0, %s90
    %s92 = sphi 0, %s90
    %s93 = sphi 0, %s92
    %s107 = sphi 0, %s93
    %s111 = sphi 0, %s111
    %s113 = sphi 0, %s111
    %s114 = sphi 0, %s113
    %s128 = sphi 0, %s114
    %s132 = sphi 0, %s132
    %s134 = sphi 0, %s132
    %s135 = sphi 0, %s134
    %s149 = sphi 0, %s135
    %s153 = sphi 0, %s153
    %s155 = sphi 0, %s153
    %s156 = sphi 0, %s155
    %s170 = sphi 0, %s156
    %s176 = sphi 0, %s178
    %s179 = sphi 0, %s176
    %s180 = sphi 0, %s179
    %s196 = sphi 0, %s180
    %s202 = sphi 0, %s204
    %s205 = sphi 0, %s202
    %s206 = sphi 0, %s205
    %s222 = sphi 0, %s206
  $region4: #{strider_block_forward.3} parent=0 // loop_header_branch
    %17 = sbr.rel (%p15) target = $region8
  $region5: #{strider_block_forward.3} parent=0 // loop_body
    %s19 = ssub.s32 %s14, 1
    %s20 = ssub.s32 %s14, 2
    %s21 = sadd.s32 %s14, 1
    %s22 = ssub.s32 %s14, %s21
    %p23 = scmp.eq.s32.totalorder %s22, 0
    %s25 = sadd.s32 %s24, 1
    %s26 = scalar_select %p23, %s24, %s25
    %p29 = pneg %p23
    %p30 = scmp.eq.s32.totalorder %s14, 3
    %p31 = por %p29, %p30
    %p32 = scmp.ne.s32.totalorder %s24, %s27
    %p33 = scmp.eq.s32.totalorder %s14, 0
    %p34 = por %p32, %p33
    %p35 = scmp.ne.s32.totalorder %s24, %s27
    %p36 = scmp.eq.s32.totalorder %s19, 3
    %p37 = por %p35, %p36
    %p38 = scmp.ne.s32.totalorder %s27, %s28
    %p39 = scmp.eq.s32.totalorder %s19, 0
    %p40 = por %p38, %p39
    %p41 = scmp.ne.s32.totalorder %s27, %s28
    %p42 = scmp.eq.s32.totalorder %s20, 3
    %p43 = por %p41, %p42
    %p45 = scmp.ne.s32.totalorder %s28, %s44
    %p46 = scmp.eq.s32.totalorder %s20, 0
    %p47 = por %p45, %p46
    %s49 = sadd.s32 %s48, 1
    %p52 = scmp.eq.s32.totalorder %s14, 3
    %p53 = scmp.ne.s32.totalorder %s48, %s50
    %p54 = scmp.eq.s32.totalorder %s14, 0
    %p55 = por %p53, %p54
    %p56 = scmp.ne.s32.totalorder %s48, %s50
    %p57 = scmp.eq.s32.totalorder %s19, 3
    %p58 = por %p56, %p57
    %p59 = scmp.ne.s32.totalorder %s50, %s51
    %p60 = scmp.eq.s32.totalorder %s19, 0
    %p61 = por %p59, %p60
    %p62 = scmp.ne.s32.totalorder %s50, %s51
    %p63 = scmp.eq.s32.totalorder %s20, 3
    %p64 = por %p62, %p63
    %p66 = scmp.ne.s32.totalorder %s51, %s65
    %p67 = scmp.eq.s32.totalorder %s20, 0
    %p68 = por %p66, %p67
    %s70 = sadd.s32 %s69, 1
    %p73 = scmp.eq.s32.totalorder %s14, 3
    %p74 = scmp.ne.s32.totalorder %s69, %s71
    %p75 = scmp.eq.s32.totalorder %s14, 0
    %p76 = por %p74, %p75
    %p77 = scmp.ne.s32.totalorder %s69, %s71
    %p78 = scmp.eq.s32.totalorder %s19, 3
    %p79 = por %p77, %p78
    %p80 = scmp.ne.s32.totalorder %s71, %s72
    %p81 = scmp.eq.s32.totalorder %s19, 0
    %p82 = por %p80, %p81
    %p83 = scmp.ne.s32.totalorder %s71, %s72
    %p84 = scmp.eq.s32.totalorder %s20, 3
    %p85 = por %p83, %p84
    %p87 = scmp.ne.s32.totalorder %s72, %s86
    %p88 = scmp.eq.s32.totalorder %s20, 0
    %p89 = por %p87, %p88
    %s91 = sadd.s32 %s90, 1
    %p94 = scmp.eq.s32.totalorder %s14, 3
    %p95 = scmp.ne.s32.totalorder %s90, %s92
    %p96 = scmp.eq.s32.totalorder %s14, 0
    %p97 = por %p95, %p96
    %p98 = scmp.ne.s32.totalorder %s90, %s92
    %p99 = scmp.eq.s32.totalorder %s19, 3
    %p100 = por %p98, %p99
    %p101 = scmp.ne.s32.totalorder %s92, %s93
    %p102 = scmp.eq.s32.totalorder %s19, 0
    %p103 = por %p101, %p102
    %p104 = scmp.ne.s32.totalorder %s92, %s93
    %p105 = scmp.eq.s32.totalorder %s20, 3
    %p106 = por %p104, %p105
    %p108 = scmp.ne.s32.totalorder %s93, %s107
    %p109 = scmp.eq.s32.totalorder %s20, 0
    %p110 = por %p108, %p109
    %s112 = sadd.s32 %s111, 1
    %p115 = scmp.eq.s32.totalorder %s14, 3
    %p116 = scmp.ne.s32.totalorder %s111, %s113
    %p117 = scmp.eq.s32.totalorder %s14, 0
    %p118 = por %p116, %p117
    %p119 = scmp.ne.s32.totalorder %s111, %s113
    %p120 = scmp.eq.s32.totalorder %s19, 3
    %p121 = por %p119, %p120
    %p122 = scmp.ne.s32.totalorder %s113, %s114
    %p123 = scmp.eq.s32.totalorder %s19, 0
    %p124 = por %p122, %p123
    %p125 = scmp.ne.s32.totalorder %s113, %s114
    %p126 = scmp.eq.s32.totalorder %s20, 3
    %p127 = por %p125, %p126
    %p129 = scmp.ne.s32.totalorder %s114, %s128
    %p130 = scmp.eq.s32.totalorder %s20, 0
    %p131 = por %p129, %p130
    %s133 = sadd.s32 %s132, 1
    %p136 = scmp.eq.s32.totalorder %s14, 3
    %p137 = scmp.ne.s32.totalorder %s132, %s134
    %p138 = scmp.eq.s32.totalorder %s14, 0
    %p139 = por %p137, %p138
    %p140 = scmp.ne.s32.totalorder %s132, %s134
    %p141 = scmp.eq.s32.totalorder %s19, 3
    %p142 = por %p140, %p141
    %p143 = scmp.ne.s32.totalorder %s134, %s135
    %p144 = scmp.eq.s32.totalorder %s19, 0
    %p145 = por %p143, %p144
    %p146 = scmp.ne.s32.totalorder %s134, %s135
    %p147 = scmp.eq.s32.totalorder %s20, 3
    %p148 = por %p146, %p147
    %p150 = scmp.ne.s32.totalorder %s135, %s149
    %p151 = scmp.eq.s32.totalorder %s20, 0
    %p152 = por %p150, %p151
    %s154 = sadd.s32 %s153, 1
    %p157 = scmp.eq.s32.totalorder %s14, 3
    %p158 = scmp.ne.s32.totalorder %s153, %s155
    %p159 = scmp.eq.s32.totalorder %s14, 0
    %p160 = por %p158, %p159
    %p161 = scmp.ne.s32.totalorder %s153, %s155
    %p162 = scmp.eq.s32.totalorder %s19, 3
    %p163 = por %p161, %p162
    %p164 = scmp.ne.s32.totalorder %s155, %s156
    %p165 = scmp.eq.s32.totalorder %s19, 0
    %p166 = por %p164, %p165
    %p167 = scmp.ne.s32.totalorder %s155, %s156
    %p168 = scmp.eq.s32.totalorder %s20, 3
    %p169 = por %p167, %p168
    %p171 = scmp.ne.s32.totalorder %s156, %s170
    %p172 = scmp.eq.s32.totalorder %s20, 0
    %p173 = por %p171, %p172
    %s174 = ssub.s32 %s14, %s21
    %p175 = scmp.eq.s32.totalorder %s174, 0
    %s177 = sadd.s32 %s176, 1
    %s178 = scalar_select %p175, %s176, %s177
    %p181 = pneg %p175
    %p182 = scmp.eq.s32.totalorder %s14, 3
    %p183 = por %p181, %p182
    %p184 = scmp.ne.s32.totalorder %s176, %s179
    %p185 = scmp.eq.s32.totalorder %s14, 0
    %p186 = por %p184, %p185
    %p187 = scmp.ne.s32.totalorder %s176, %s179
    %p188 = scmp.eq.s32.totalorder %s19, 3
    %p189 = por %p187, %p188
    %p190 = scmp.ne.s32.totalorder %s179, %s180
    %p191 = scmp.eq.s32.totalorder %s19, 0
    %p192 = por %p190, %p191
    %p193 = scmp.ne.s32.totalorder %s179, %s180
    %p194 = scmp.eq.s32.totalorder %s20, 3
    %p195 = por %p193, %p194
    %p197 = scmp.ne.s32.totalorder %s180, %s196
    %p198 = scmp.eq.s32.totalorder %s20, 0
    %p199 = por %p197, %p198
    %s200 = ssub.s32 %s14, %s21
    %p201 = scmp.eq.s32.totalorder %s200, 0
    %s203 = sadd.s32 %s202, 1
    %s204 = scalar_select %p201, %s202, %s203
    %p207 = pneg %p201
    %p208 = scmp.eq.s32.totalorder %s14, 3
    %p209 = por %p207, %p208
    %p210 = scmp.ne.s32.totalorder %s202, %s205
    %p211 = scmp.eq.s32.totalorder %s14, 0
    %p212 = por %p210, %p211
    %p213 = scmp.ne.s32.totalorder %s202, %s205
    %p214 = scmp.eq.s32.totalorder %s19, 3
    %p215 = por %p213, %p214
    %p216 = scmp.ne.s32.totalorder %s205, %s206
    %p217 = scmp.eq.s32.totalorder %s19, 0
    %p218 = por %p216, %p217
    %p219 = scmp.ne.s32.totalorder %s205, %s206
    %p220 = scmp.eq.s32.totalorder %s20, 3
    %p221 = por %p219, %p220
    %p223 = scmp.ne.s32.totalorder %s206, %s222
    %p224 = scmp.eq.s32.totalorder %s20, 0
    %p225 = por %p223, %p224
    %p226 = scmp.le.s32.totalorder 1, %s14
    %p227 = scmp.lt.s32.totalorder %s14, 5
    %p228 = pnand %p226, %p227
    %p229 = pneg %p228
    // Predicated region
    $region9: #{strider_block_forward.3} parent=5 // pred_check
      _
    $region10: #{strider_block_forward.3} parent=5 // pred_check_branch
      %231 = sbr.rel (%p228) target = $region12
    $region11: #{strider_block_forward.3} parent=5 // pred_region
      %s232 = ssub.s32 %s14, 1
      // Predicated region
      $region13: #{strider_block_forward.3} parent=11 // pred_check
        %p233 = pneg %p61
      $region14: #{strider_block_forward.3} parent=11 // pred_check_branch
        %235 = sbr.rel (%p233) target = $region16
      $region15: #{strider_block_forward.3} parent=11 // pred_region
        _
      $region16: #{strider_block_forward.3} parent=11 // pred_fallthru
        _
      // Predicated region
      $region17: #{strider_block_forward.3} parent=11 // pred_check
        %p236 = pneg %p82
      $region18: #{strider_block_forward.3} parent=11 // pred_check_branch
        %238 = sbr.rel (%p236) target = $region20
      $region19: #{strider_block_forward.3} parent=11 // pred_region
        _
      $region20: #{strider_block_forward.3} parent=11 // pred_fallthru
        _
      // Predicated region
      $region21: #{strider_block_forward.3} parent=11 // pred_check
        %p239 = pneg %p103
      $region22: #{strider_block_forward.3} parent=11 // pred_check_branch
        %241 = sbr.rel (%p239) target = $region24
      $region23: #{strider_block_forward.3} parent=11 // pred_region
        _
      $region24: #{strider_block_forward.3} parent=11 // pred_fallthru
        _
      // Predicated region
      $region25: #{strider_block_forward.3} parent=11 // pred_check
        %p242 = pneg %p124
      $region26: #{strider_block_forward.3} parent=11 // pred_check_branch
        %244 = sbr.rel (%p242) target = $region28
      $region27: #{strider_block_forward.3} parent=11 // pred_region
        _
      $region28: #{strider_block_forward.3} parent=11 // pred_fallthru
        _
      // Predicated region
      $region29: #{strider_block_forward.3} parent=11 // pred_check
        %p245 = pneg %p145
      $region30: #{strider_block_forward.3} parent=11 // pred_check_branch
        %247 = sbr.rel (%p245) target = $region32
      $region31: #{strider_block_forward.3} parent=11 // pred_region
        _
      $region32: #{strider_block_forward.3} parent=11 // pred_fallthru
        _
      // Predicated region
      $region33: #{strider_block_forward.3} parent=11 // pred_check
        %p248 = pneg %p166
      $region34: #{strider_block_forward.3} parent=11 // pred_check_branch
        %250 = sbr.rel (%p248) target = $region36
      $region35: #{strider_block_forward.3} parent=11 // pred_region
        _
      $region36: #{strider_block_forward.3} parent=11 // pred_fallthru
        _
    $region12: #{strider_block_forward.3} parent=5 // pred_fallthru
      _
    %p251 = scmp.lt.s32.totalorder %s14, 4
    // Predicated region
    $region37: #{strider_block_forward.3} parent=5 // pred_check
      %p252 = pneg %p251
    $region38: #{strider_block_forward.3} parent=5 // pred_check_branch
      %254 = sbr.rel (%p252) target = $region40
    $region39: #{strider_block_forward.3} parent=5 // pred_region
      // Predicated region
      $region41: #{strider_block_forward.3} parent=39 // pred_check
        %p255 = pneg %p34
      $region42: #{strider_block_forward.3} parent=39 // pred_check_branch
        %257 = sbr.rel (%p255) target = $region44
      $region43: #{strider_block_forward.3} parent=39 // pred_region
        %s258 = smul.u32 16, %s14
        %p259 = scmp.lt.s32.totalorder %s258, 63
        %s260 = scalar_select %p259, %s258, 63
        %s261 = smul.addr %s260, 4
        %s262 = scalar_lea.vmem %s0, %s261
        %s263 = smul.u32 16, %s14
      $region44: #{strider_block_forward.3} parent=39 // pred_fallthru
        _
      // Predicated region
      $region45: #{strider_block_forward.3} parent=39 // pred_check
        %p264 = pneg %p186
      $region46: #{strider_block_forward.3} parent=39 // pred_check_branch
        %266 = sbr.rel (%p264) target = $region48
      $region47: #{strider_block_forward.3} parent=39 // pred_region
        %s267 = smul.u32 16, %s14
        %p268 = scmp.lt.s32.totalorder %s267, 63
        %s269 = scalar_select %p268, %s267, 63
        %s270 = smul.addr %s269, 8
        %s271 = scalar_lea.vmem %s7, %s270
        %s272 = smul.u32 16, %s14
      $region48: #{strider_block_forward.3} parent=39 // pred_fallthru
        _
    $region40: #{strider_block_forward.3} parent=5 // pred_fallthru
      _
    %p273 = scmp.le.s32.totalorder 1, %s14
    %p274 = scmp.lt.s32.totalorder %s14, 5
    %p275 = pnand %p273, %p274
    %p276 = pneg %p275
    // Predicated region
    $region49: #{strider_block_forward.3} parent=5 // pred_check
      _
    $region50: #{strider_block_forward.3} parent=5 // pred_check_branch
      %278 = sbr.rel (%p275) target = $region52
    $region51: #{strider_block_forward.3} parent=5 // pred_region
      %s279 = ssub.s32 %s14, 1
      %s280 = smul.u32 16, %s19
      %p281 = scmp.lt.s32.totalorder %s280, 63
      %s282 = scalar_select %p281, %s280, 63
      %s283 = smul.addr %s282, 4
      %s284 = scalar_lea.vmem %s0, %s283
      %p285 = pneg %p40
      %p286 = pneg %p37
      %p287 = pneg %p61
      %p288 = pneg %p58
      %p289 = pneg %p82
      %p290 = pneg %p79
      %p291 = pneg %p103
      %p292 = pneg %p100
      %p293 = pneg %p124
      %p294 = pneg %p121
      %p295 = pneg %p145
      %p296 = pneg %p142
      %p297 = pneg %p166
      %p298 = pneg %p163
      %s299 = smul.u32 16, %s19
      %p300 = scmp.lt.s32.totalorder %s299, 63
      %s301 = scalar_select %p300, %s299, 63
      %s302 = smul.addr %s301, 8
      %s303 = scalar_lea.vmem %s7, %s302
      %p304 = pneg %p192
      %p305 = pneg %p189
      %p306 = pneg %p218
      %p307 = pneg %p215
      %s308 = smul.u32 16, %s19
      %p309 = scmp.lt.s32.totalorder %s308, 63
      %s310 = scalar_select %p309, %s308, 63
      %s311 = smul.addr %s310, 8
      %s312 = scalar_lea.vmem %s8, %s311
      %s313 = smul.u32 16, %s19
      %p314 = scmp.lt.s32.totalorder %s313, 63
      %s315 = scalar_select %p314, %s313, 63
      %s316 = smul.addr %s315, 4
      %s317 = scalar_lea.vmem %s0, %s316
      %s318 = smul.u32 16, %s19
      %s319 = smul.u32 16, %s19
      %p320 = scmp.lt.s32.totalorder %s319, 63
      %s321 = scalar_select %p320, %s319, 63
      %s322 = smul.addr %s321, 8
      %s323 = scalar_lea.vmem %s7, %s322
      %s324 = smul.u32 16, %s19
      %s325 = smul.u32 16, %s19
      %p326 = scmp.lt.s32.totalorder %s325, 63
      %s327 = scalar_select %p326, %s325, 63
      %s328 = smul.addr %s327, 8
      %s329 = scalar_lea.vmem %s8, %s328
      %s330 = smul.u32 16, %s19
      %v332 = vld [vmem:[%s317] sm:$0xf]
      %v333 = vld [vmem:[%s317 + $0x4] sm:$0xf]
      %v334 = vld [vmem:[%s317 + $0x8] sm:$0xf]
      %v335 = vld [vmem:[%s317 + $0xc] sm:$0xf]
      %v336 = vld [vmem:[%s317 + $0x10] sm:$0xf]
      %v337 = vld [vmem:[%s317 + $0x14] sm:$0xf]
      %v338 = vld [vmem:[%s317 + $0x18] sm:$0xf]
      %v339 = vld [vmem:[%s317 + $0x1c] sm:$0xf]
      %v340 = vld [vmem:[%s317 + $0x20] sm:$0xf]
      %v341 = vld [vmem:[%s317 + $0x24] sm:$0xf]
      %v342 = vld [vmem:[%s317 + $0x28] sm:$0xf]
      %v343 = vld [vmem:[%s317 + $0x2c] sm:$0xf]
      %v344 = vld [vmem:[%s317 + $0x30] sm:$0xf]
      %v345 = vld [vmem:[%s317 + $0x34] sm:$0xf]
      %v346 = vld [vmem:[%s317 + $0x38] sm:$0xf]
      %v347 = vld [vmem:[%s317 + $0x3c] sm:$0xf]
      %v348 = vld [vmem:[%s1] sm:$0xf]
      %v349 = vld [vmem:[%s1 + $0x4] sm:$0xf]
      %v350 = vld [vmem:[%s1 + $0x8] sm:$0xf]
      %v351 = vld [vmem:[%s1 + $0xc] sm:$0xf]
      %v352 = vld [vmem:[%s1 + $0x10] sm:$0xf]
      %v353 = vld [vmem:[%s1 + $0x14] sm:$0xf]
      %v354 = vld [vmem:[%s1 + $0x18] sm:$0xf]
      %v355 = vld [vmem:[%s1 + $0x1c] sm:$0xf]
      %v356 = vld [vmem:[%s1 + $0x20] sm:$0xf]
      %v373 = vunpack.c.l.b16 %v332
      %v374 = vunpack.c.l.b16 %v333
      %v375 = vunpack.c.l.b16 %v334
      %v376 = vunpack.c.l.b16 %v335
      %v377 = vunpack.c.l.b16 %v336
      %v378 = vunpack.c.l.b16 %v337
      %v379 = vunpack.c.l.b16 %v338
      %v380 = vunpack.c.l.b16 %v339
      %v381 = vunpack.c.l.b16 %v340
      %v382 = vunpack.c.l.b16 %v341
      %v383 = vunpack.c.l.b16 %v342
      %v384 = vunpack.c.l.b16 %v343
      %v385 = vunpack.c.l.b16 %v344
      %v386 = vunpack.c.l.b16 %v345
      %v387 = vunpack.c.l.b16 %v346
      %v388 = vunpack.c.l.b16 %v347
      %v389 = vpack.c.b16 %v374, %v373
      %v390 = vpack.c.b16 %v376, %v375
      %v391 = vpack.c.b16 %v378, %v377
      %v392 = vpack.c.b16 %v380, %v379
      %v393 = vpack.c.b16 %v382, %v381
      %v394 = vpack.c.b16 %v384, %v383
      %v395 = vpack.c.b16 %v386, %v385
      %v396 = vpack.c.b16 %v388, %v387
      %v406 = vunpack.c.l.b16 %v348
      %v407 = vunpack.c.l.b16 %v349
      %v408 = vunpack.c.l.b16 %v350
      %v409 = vunpack.c.l.b16 %v351
      %v410 = vunpack.c.l.b16 %v352
      %v411 = vunpack.c.l.b16 %v353
      %v412 = vunpack.c.l.b16 %v354
      %v413 = vunpack.c.l.b16 %v355
      %v414 = vunpack.c.l.b16 %v356
      %v415 = vpack.c.b16 %v407, %v406
      %v416 = vpack.c.b16 %v409, %v408
      %v417 = vpack.c.b16 %v411, %v410
      %v418 = vpack.c.b16 %v413, %v412
      %v419 = vpack.c.b16 %v414, %v414
      %vm424 = vcmask 588800
      %v426 = vsel %vm424, %v389, 0
      %v429 = vsel %vm424, %v390, 0
      %v432 = vsel %vm424, %v391, 0
      %v435 = vsel %vm424, %v392, 0
      %v438 = vsel %vm424, %v393, 0
      %v441 = vsel %vm424, %v394, 0
      %v444 = vsel %vm424, %v395, 0
      %v447 = vsel %vm424, %v396, 0
      %vm449 = vcmask 1043456
      %v451 = vsel %vm449, %v419, 0
      %453 = vmatprep.subr.bf16.mxu0 0
      %454 = vmatpush1.bf16.msra.mxu0 %v415
      %455 = vmatprep.subr.bf16.mxu0 0
      %456 = vmatpush1.bf16.msra.mxu0 %v416
      %457 = vmatprep.subr.bf16.mxu0 0
      %458 = vmatpush1.bf16.msra.mxu0 %v417
      %459 = vmatprep.subr.bf16.mxu0 0
      %460 = vmatpush1.bf16.msra.mxu0 %v418
      %461 = vmatprep.subr.bf16.mxu0 0
      %462 = vmatpush1.bf16.msra.mxu0 %v451
      %463 = vmatprep.subr.bf16.mxu0 0
      %464 = vmatpush1.bf16.msra.mxu0 0
      %465 = vmatprep.subr.bf16.mxu0 0
      %466 = vmatpush1.bf16.msra.mxu0 0
      %467 = vmatprep.subr.bf16.mxu0 0
      %468 = vmatpush1.bf16.msra.mxu0 0
      %469 = vmatprep.subr.bf16.mxu0 0
      %470 = vmatpush1.bf16.msra.mxu0 0
      %471 = vmatprep.subr.bf16.mxu0 0
      %472 = vmatpush1.bf16.msra.mxu0 0
      %473 = vmatprep.subr.bf16.mxu0 0
      %474 = vmatpush1.bf16.msra.mxu0 0
      %475 = vmatprep.subr.bf16.mxu0 0
      %476 = vmatpush1.bf16.msra.mxu0 0
      %477 = vmatprep.subr.bf16.mxu0 0
      %478 = vmatpush1.bf16.msra.mxu0 0
      %479 = vmatprep.subr.bf16.mxu0 0
      %480 = vmatpush1.bf16.msra.mxu0 0
      %481 = vmatprep.subr.bf16.mxu0 0
      %482 = vmatpush1.bf16.msra.mxu0 0
      %483 = vmatprep.subr.bf16.mxu0 0
      %484 = vmatpush1.bf16.msra.mxu0 0
      %485 = vmatprep.mubr.bf16.mxu0 0
      %486 = vmatmul.mubr.bf16.gmra.mrb[0].mxu0 %v426
      %v487 = vpop.f32.mrb[0].mxu0
      %v488 = vadd.f32 0.0, %v487
      %v489 = vpop.f32.mrb[0].mxu0
      %v490 = vpop.f32.mrb[0].mxu0
      %v491 = vadd.f32 0.0, %v490
      %v492 = vpop.f32.mrb[0].mxu0
      %493 = vmatprep.mubr.bf16.mxu0 0
      %494 = vmatmul.mubr.bf16.gmra.mrb[0].mxu0 %v429
      %v495 = vpop.f32.mrb[0].mxu0
      %v496 = vadd.f32 0.0, %v495
      %v497 = vpop.f32.mrb[0].mxu0
      %v498 = vpop.f32.mrb[0].mxu0
      %v499 = vadd.f32 0.0, %v498
      %v500 = vpop.f32.mrb[0].mxu0
      %501 = vmatprep.mubr.bf16.mxu0 0
      %502 = vmatmul.mubr.bf16.gmra.mrb[0].mxu0 %v432
      %v503 = vpop.f32.mrb[0].mxu0
      %v504 = vadd.f32 0.0, %v503
      %v505 = vpop.f32.mrb[0].mxu0
      %v506 = vpop.f32.mrb[0].mxu0
      %v507 = vadd.f32 0.0, %v506
      %v508 = vpop.f32.mrb[0].mxu0
      %509 = vmatprep.mubr.bf16.mxu0 0
      %510 = vmatmul.mubr.bf16.gmra.mrb[0].mxu0 %v435
      %v511 = vpop.f32.mrb[0].mxu0
      %v512 = vadd.f32 0.0, %v511
      %v513 = vpop.f32.mrb[0].mxu0
      %v514 = vpop.f32.mrb[0].mxu0
      %v515 = vadd.f32 0.0, %v514
      %v516 = vpop.f32.mrb[0].mxu0
      %517 = vmatprep.mubr.bf16.mxu0 0
      %518 = vmatmul.mubr.bf16.gmra.mrb[0].mxu0 %v438
      %v519 = vpop.f32.mrb[0].mxu0
      %v520 = vadd.f32 0.0, %v519
      %v521 = vpop.f32.mrb[0].mxu0
      %v522 = vpop.f32.mrb[0].mxu0
      %v523 = vadd.f32 0.0, %v522
      %v524 = vpop.f32.mrb[0].mxu0
      %525 = vmatprep.mubr.bf16.mxu0 0
      %526 = vmatmul.mubr.bf16.gmra.mrb[0].mxu0 %v441
      %v527 = vpop.f32.mrb[0].mxu0
      %v528 = vadd.f32 0.0, %v527
      %v529 = vpop.f32.mrb[0].mxu0
      %v530 = vpop.f32.mrb[0].mxu0
      %v531 = vadd.f32 0.0, %v530
      %v532 = vpop.f32.mrb[0].mxu0
      %533 = vmatprep.mubr.bf16.mxu0 0
      %534 = vmatmul.mubr.bf16.gmra.mrb[0].mxu0 %v444
      %v535 = vpop.f32.mrb[0].mxu0
      %v536 = vadd.f32 0.0, %v535
      %v537 = vpop.f32.mrb[0].mxu0
      %v538 = vpop.f32.mrb[0].mxu0
      %v539 = vadd.f32 0.0, %v538
      %v540 = vpop.f32.mrb[0].mxu0
      %541 = vmatprep.mubr.bf16.mxu0 0
      %542 = vmatmul.mubr.bf16.gmra.mrb[0].mxu0 %v447
      %v543 = vpop.f32.mrb[0].mxu0
      %v544 = vadd.f32 0.0, %v543
      %v545 = vpop.f32.mrb[0].mxu0
      %v546 = vpop.f32.mrb[0].mxu0
      %v547 = vadd.f32 0.0, %v546
      %v548 = vpop.f32.mrb[0].mxu0
      %549 = vdwg.mxu0
      %v550 = vld [vmem:[%s2] sm:$0x1]
      %v552 = vlaneseq
      %v553 = vshrl.u32 %v552, 7
      %v554 = vsub.s32 0, %v553
      %v555 = vrot.slane %v550, %v554
      %v557 = vmul.f32 %v488, %v555
      %v558 = vmul.f32 %v491, %v555
      %v559 = vmul.f32 %v496, %v555
      %v560 = vmul.f32 %v499, %v555
      %v561 = vmul.f32 %v504, %v555
      %v562 = vmul.f32 %v507, %v555
      %v563 = vmul.f32 %v512, %v555
      %v564 = vmul.f32 %v515, %v555
      %v565 = vmul.f32 %v520, %v555
      %v566 = vmul.f32 %v523, %v555
      %v567 = vmul.f32 %v528, %v555
      %v568 = vmul.f32 %v531, %v555
      %v569 = vmul.f32 %v536, %v555
      %v570 = vmul.f32 %v539, %v555
      %v571 = vmul.f32 %v544, %v555
      %v572 = vmul.f32 %v547, %v555
      %v573 = vld [vmem:[%s3] sm:$0x1]
      %v575 = vlaneseq
      %v576 = vshrl.u32 %v575, 7
      %v577 = vsub.s32 0, %v576
      %v578 = vrot.slane %v573, %v577
      %v580 = vadd.f32 %v557, %v578
      %v581 = vadd.f32 %v558, %v578
      %v582 = vadd.f32 %v559, %v578
      %v583 = vadd.f32 %v560, %v578
      %v584 = vadd.f32 %v561, %v578
      %v585 = vadd.f32 %v562, %v578
      %v586 = vadd.f32 %v563, %v578
      %v587 = vadd.f32 %v564, %v578
      %v588 = vadd.f32 %v565, %v578
      %v589 = vadd.f32 %v566, %v578
      %v590 = vadd.f32 %v567, %v578
      %v591 = vadd.f32 %v568, %v578
      %v592 = vadd.f32 %v569, %v578
      %v593 = vadd.f32 %v570, %v578
      %v594 = vadd.f32 %v571, %v578
      %v595 = vadd.f32 %v572, %v578
      %v596 = vmax.f32 %v580, 0.0
      %v597 = vmax.f32 %v581, 0.0
      %v598 = vmax.f32 %v582, 0.0
      %v599 = vmax.f32 %v583, 0.0
      %v600 = vmax.f32 %v584, 0.0
      %v601 = vmax.f32 %v585, 0.0
      %v602 = vmax.f32 %v586, 0.0
      %v603 = vmax.f32 %v587, 0.0
      %v604 = vmax.f32 %v588, 0.0
      %v605 = vmax.f32 %v589, 0.0
      %v606 = vmax.f32 %v590, 0.0
      %v607 = vmax.f32 %v591, 0.0
      %v608 = vmax.f32 %v592, 0.0
      %v609 = vmax.f32 %v593, 0.0
      %v610 = vmax.f32 %v594, 0.0
      %v611 = vmax.f32 %v595, 0.0
      %v612 = vpack.c.bf16 %v597, %v596
      %v613 = vpack.c.bf16 %v599, %v598
      %v614 = vpack.c.bf16 %v601, %v600
      %v615 = vpack.c.bf16 %v603, %v602
      %v616 = vpack.c.bf16 %v605, %v604
      %v617 = vpack.c.bf16 %v607, %v606
      %v618 = vpack.c.bf16 %v609, %v608
      %v619 = vpack.c.bf16 %v611, %v610
      %v620 = vld [vmem:[%s4] sm:$0xf]
      %vm621 = vcmask 64512
      %v623 = vsel %vm621, %v612, 0
      %v626 = vsel %vm621, %v613, 0
      %v629 = vsel %vm621, %v614, 0
      %v632 = vsel %vm621, %v615, 0
      %v635 = vsel %vm621, %v616, 0
      %v638 = vsel %vm621, %v617, 0
      %v641 = vsel %vm621, %v618, 0
      %v644 = vsel %vm621, %v619, 0
      %v647 = vsel %vm449, %v620, 0
      %649 = vmatprep.subr.bf16.mxu0 0
      %650 = vmatpush1.bf16.msra.mxu0 %v647
      %651 = vmatprep.subr.bf16.mxu0 0
      %652 = vmatpush1.bf16.msra.mxu0 0
      %653 = vmatprep.subr.bf16.mxu0 0
      %654 = vmatpush1.bf16.msra.mxu0 0
      %655 = vmatprep.subr.bf16.mxu0 0
      %656 = vmatpush1.bf16.msra.mxu0 0
      %657 = vmatprep.subr.bf16.mxu0 0
      %658 = vmatpush1.bf16.msra.mxu0 0
      %659 = vmatprep.subr.bf16.mxu0 0
      %660 = vmatpush1.bf16.msra.mxu0 0
      %661 = vmatprep.subr.bf16.mxu0 0
      %662 = vmatpush1.bf16.msra.mxu0 0
      %663 = vmatprep.subr.bf16.mxu0 0
      %664 = vmatpush1.bf16.msra.mxu0 0
      %665 = vmatprep.subr.bf16.mxu0 0
      %666 = vmatpush1.bf16.msra.mxu0 0
      %667 = vmatprep.subr.bf16.mxu0 0
      %668 = vmatpush1.bf16.msra.mxu0 0
      %669 = vmatprep.subr.bf16.mxu0 0
      %670 = vmatpush1.bf16.msra.mxu0 0
      %671 = vmatprep.subr.bf16.mxu0 0
      %672 = vmatpush1.bf16.msra.mxu0 0
      %673 = vmatprep.subr.bf16.mxu0 0
      %674 = vmatpush1.bf16.msra.mxu0 0
      %675 = vmatprep.subr.bf16.mxu0 0
      %676 = vmatpush1.bf16.msra.mxu0 0
      %677 = vmatprep.subr.bf16.mxu0 0
      %678 = vmatpush1.bf16.msra.mxu0 0
      %679 = vmatprep.subr.bf16.mxu0 0
      %680 = vmatpush1.bf16.msra.mxu0 0
      %681 = vmatprep.mubr.bf16.mxu0 0
      %682 = vmatmul.mubr.bf16.gmra.mrb[0].mxu0 %v623
      %v683 = vpop.f32.mrb[0].mxu0
      %v684 = vadd.f32 0.0, %v683
      %v685 = vpop.f32.mrb[0].mxu0
      %v686 = vpop.f32.mrb[0].mxu0
      %v687 = vadd.f32 0.0, %v686
      %v688 = vpop.f32.mrb[0].mxu0
      %689 = vmatprep.mubr.bf16.mxu0 0
      %690 = vmatmul.mubr.bf16.gmra.mrb[0].mxu0 %v626
      %v691 = vpop.f32.mrb[0].mxu0
      %v692 = vadd.f32 0.0, %v691
      %v693 = vpop.f32.mrb[0].mxu0
      %v694 = vpop.f32.mrb[0].mxu0
      %v695 = vadd.f32 0.0, %v694
      %v696 = vpop.f32.mrb[0].mxu0
      %697 = vmatprep.mubr.bf16.mxu0 0
      %698 = vmatmul.mubr.bf16.gmra.mrb[0].mxu0 %v629
      %v699 = vpop.f32.mrb[0].mxu0
      %v700 = vadd.f32 0.0, %v699
      %v701 = vpop.f32.mrb[0].mxu0
      %v702 = vpop.f32.mrb[0].mxu0
      %v703 = vadd.f32 0.0, %v702
      %v704 = vpop.f32.mrb[0].mxu0
      %705 = vmatprep.mubr.bf16.mxu0 0
      %706 = vmatmul.mubr.bf16.gmra.mrb[0].mxu0 %v632
      %v707 = vpop.f32.mrb[0].mxu0
      %v708 = vadd.f32 0.0, %v707
      %v709 = vpop.f32.mrb[0].mxu0
      %v710 = vpop.f32.mrb[0].mxu0
      %v711 = vadd.f32 0.0, %v710
      %v712 = vpop.f32.mrb[0].mxu0
      %713 = vmatprep.mubr.bf16.mxu0 0
      %714 = vmatmul.mubr.bf16.gmra.mrb[0].mxu0 %v635
      %v715 = vpop.f32.mrb[0].mxu0
      %v716 = vadd.f32 0.0, %v715
      %v717 = vpop.f32.mrb[0].mxu0
      %v718 = vpop.f32.mrb[0].mxu0
      %v719 = vadd.f32 0.0, %v718
      %v720 = vpop.f32.mrb[0].mxu0
      %721 = vmatprep.mubr.bf16.mxu0 0
      %722 = vmatmul.mubr.bf16.gmra.mrb[0].mxu0 %v638
      %v723 = vpop.f32.mrb[0].mxu0
      %v724 = vadd.f32 0.0, %v723
      %v725 = vpop.f32.mrb[0].mxu0
      %v726 = vpop.f32.mrb[0].mxu0
      %v727 = vadd.f32 0.0, %v726
      %v728 = vpop.f32.mrb[0].mxu0
      %729 = vmatprep.mubr.bf16.mxu0 0
      %730 = vmatmul.mubr.bf16.gmra.mrb[0].mxu0 %v641
      %v731 = vpop.f32.mrb[0].mxu0
      %v732 = vadd.f32 0.0, %v731
      %v733 = vpop.f32.mrb[0].mxu0
      %v734 = vpop.f32.mrb[0].mxu0
      %v735 = vadd.f32 0.0, %v734
      %v736 = vpop.f32.mrb[0].mxu0
      %737 = vmatprep.mubr.bf16.mxu0 0
      %738 = vmatmul.mubr.bf16.gmra.mrb[0].mxu0 %v644
      %v739 = vpop.f32.mrb[0].mxu0
      %v740 = vadd.f32 0.0, %v739
      %v741 = vpop.f32.mrb[0].mxu0
      %v742 = vpop.f32.mrb[0].mxu0
      %v743 = vadd.f32 0.0, %v742
      %v744 = vpop.f32.mrb[0].mxu0
      %745 = vdwg.mxu0
      %v746 = vld [vmem:[%s5] sm:$0x1]
      %v748 = vlaneseq
      %v749 = vshrl.u32 %v748, 7
      %v750 = vsub.s32 0, %v749
      %v751 = vrot.slane %v746, %v750
      %v753 = vmul.f32 %v684, %v751
      %v754 = vmul.f32 %v687, %v751
      %v755 = vmul.f32 %v692, %v751
      %v756 = vmul.f32 %v695, %v751
      %v757 = vmul.f32 %v700, %v751
      %v758 = vmul.f32 %v703, %v751
      %v759 = vmul.f32 %v708, %v751
      %v760 = vmul.f32 %v711, %v751
      %v761 = vmul.f32 %v716, %v751
      %v762 = vmul.f32 %v719, %v751
      %v763 = vmul.f32 %v724, %v751
      %v764 = vmul.f32 %v727, %v751
      %v765 = vmul.f32 %v732, %v751
      %v766 = vmul.f32 %v735, %v751
      %v767 = vmul.f32 %v740, %v751
      %v768 = vmul.f32 %v743, %v751
      %v769 = vld [vmem:[%s6] sm:$0x1]
      %v771 = vlaneseq
      %v772 = vshrl.u32 %v771, 7
      %v773 = vsub.s32 0, %v772
      %v774 = vrot.slane %v769, %v773
      %v776 = vadd.f32 %v753, %v774
      %v777 = vadd.f32 %v754, %v774
      %v778 = vadd.f32 %v755, %v774
      %v779 = vadd.f32 %v756, %v774
      %v780 = vadd.f32 %v757, %v774
      %v781 = vadd.f32 %v758, %v774
      %v782 = vadd.f32 %v759, %v774
      %v783 = vadd.f32 %v760, %v774
      %v784 = vadd.f32 %v761, %v774
      %v785 = vadd.f32 %v762, %v774
      %v786 = vadd.f32 %v763, %v774
      %v787 = vadd.f32 %v764, %v774
      %v788 = vadd.f32 %v765, %v774
      %v789 = vadd.f32 %v766, %v774
      %v790 = vadd.f32 %v767, %v774
      %v791 = vadd.f32 %v768, %v774
      %v792 = vld [vmem:[%s323] sm:$0xff]
      %v793 = vld [vmem:[%s323 + $0x8] sm:$0xff]
      %v794 = vld [vmem:[%s323 + $0x10] sm:$0xff]
      %v795 = vld [vmem:[%s323 + $0x18] sm:$0xff]
      %v796 = vld [vmem:[%s323 + $0x20] sm:$0xff]
      %v797 = vld [vmem:[%s323 + $0x28] sm:$0xff]
      %v798 = vld [vmem:[%s323 + $0x30] sm:$0xff]
      %v799 = vld [vmem:[%s323 + $0x38] sm:$0xff]
      %v800 = vld [vmem:[%s323 + $0x40] sm:$0xff]
      %v801 = vld [vmem:[%s323 + $0x48] sm:$0xff]
      %v802 = vld [vmem:[%s323 + $0x50] sm:$0xff]
      %v803 = vld [vmem:[%s323 + $0x58] sm:$0xff]
      %v804 = vld [vmem:[%s323 + $0x60] sm:$0xff]
      %v805 = vld [vmem:[%s323 + $0x68] sm:$0xff]
      %v806 = vld [vmem:[%s323 + $0x70] sm:$0xff]
      %v807 = vld [vmem:[%s323 + $0x78] sm:$0xff]
      %v808 = vadd.f32 %v776, %v792
      %v809 = vadd.f32 %v777, %v793
      %v810 = vadd.f32 %v778, %v794
      %v811 = vadd.f32 %v779, %v795
      %v812 = vadd.f32 %v780, %v796
      %v813 = vadd.f32 %v781, %v797
      %v814 = vadd.f32 %v782, %v798
      %v815 = vadd.f32 %v783, %v799
      %v816 = vadd.f32 %v784, %v800
      %v817 = vadd.f32 %v785, %v801
      %v818 = vadd.f32 %v786, %v802
      %v819 = vadd.f32 %v787, %v803
      %v820 = vadd.f32 %v788, %v804
      %v821 = vadd.f32 %v789, %v805
      %v822 = vadd.f32 %v790, %v806
      %v823 = vadd.f32 %v791, %v807
      %vm824 = vcmask 130048
      %825 = vst.msk [vmem:[%s329] sm:$0xff] %vm824, %v808
      %826 = vst.msk [vmem:[%s329 + $0x8] sm:$0xff] %vm824, %v809
      %827 = vst.msk [vmem:[%s329 + $0x10] sm:$0xff] %vm824, %v810
      %828 = vst.msk [vmem:[%s329 + $0x18] sm:$0xff] %vm824, %v811
      %829 = vst.msk [vmem:[%s329 + $0x20] sm:$0xff] %vm824, %v812
      %830 = vst.msk [vmem:[%s329 + $0x28] sm:$0xff] %vm824, %v813
      %831 = vst.msk [vmem:[%s329 + $0x30] sm:$0xff] %vm824, %v814
      %832 = vst.msk [vmem:[%s329 + $0x38] sm:$0xff] %vm824, %v815
      %833 = vst.msk [vmem:[%s329 + $0x40] sm:$0xff] %vm824, %v816
      %834 = vst.msk [vmem:[%s329 + $0x48] sm:$0xff] %vm824, %v817
      %835 = vst.msk [vmem:[%s329 + $0x50] sm:$0xff] %vm824, %v818
      %836 = vst.msk [vmem:[%s329 + $0x58] sm:$0xff] %vm824, %v819
      %837 = vst.msk [vmem:[%s329 + $0x60] sm:$0xff] %vm824, %v820
      %838 = vst.msk [vmem:[%s329 + $0x68] sm:$0xff] %vm824, %v821
      %839 = vst.msk [vmem:[%s329 + $0x70] sm:$0xff] %vm824, %v822
      %840 = vst.msk [vmem:[%s329 + $0x78] sm:$0xff] %vm824, %v823
      %s841 = smul.u32 16, %s19
      %p842 = scmp.lt.s32.totalorder %s841, 63
      %s843 = scalar_select %p842, %s841, 63
      %s844 = smul.addr %s843, 8
      %s845 = scalar_lea.vmem %s8, %s844
      // Predicated region
      $region53: #{strider_block_forward.3} parent=51 // pred_check
        %p846 = pneg %p215
      $region54: #{strider_block_forward.3} parent=51 // pred_check_branch
        %848 = sbr.rel (%p846) target = $region56
      $region55: #{strider_block_forward.3} parent=51 // pred_region
        %s849 = smul.u32 16, %s19
      $region56: #{strider_block_forward.3} parent=51 // pred_fallthru
        _
    $region52: #{strider_block_forward.3} parent=5 // pred_fallthru
      _
    %p850 = scmp.le.s32.totalorder 2, %s14
    // Predicated region
    $region57: #{strider_block_forward.3} parent=5 // pred_check
      %p851 = pneg %p850
    $region58: #{strider_block_forward.3} parent=5 // pred_check_branch
      %853 = sbr.rel (%p851) target = $region60
    $region59: #{strider_block_forward.3} parent=5 // pred_region
      %s854 = ssub.s32 %s14, 2
      // Predicated region
      $region61: #{strider_block_forward.3} parent=59 // pred_check
        %p855 = pneg %p221
      $region62: #{strider_block_forward.3} parent=59 // pred_check_branch
        %857 = sbr.rel (%p855) target = $region64
      $region63: #{strider_block_forward.3} parent=59 // pred_region
        %s858 = smul.u32 16, %s20
        %p859 = scmp.lt.s32.totalorder %s858, 63
        %s860 = scalar_select %p859, %s858, 63
        %s861 = smul.addr %s860, 8
        %s862 = scalar_lea.vmem %s8, %s861
      $region64: #{strider_block_forward.3} parent=59 // pred_fallthru
        _
    $region60: #{strider_block_forward.3} parent=5 // pred_fallthru
      _
  $region6: #{strider_block_forward.3} parent=0 // loop_footer
    %s18 = sadd.s32 1, %s14
  $region7: #{strider_block_forward.3} parent=0 // loop_footer_branch
    %13 = sbr.rel target = $region3
  $region8: #{strider_block_forward.3} parent=0 // loop_exit
    _

// kernel: strider_block_forward.2
$region0: #{strider_block_forward.2}
  #allocation0 [shape = 'u32[]', space=smem, size = 0x4, offset = 0x4, fixed_abs, tag = 'smem constant byte address 0x4 - core index']
  #allocation1 [shape = 'u32[144,128]{1,0:T(1,128)}', space=vmem, size = 0x12000, scoped, tag = 'internal scratch']
  %s0 = inlined_call_operand.vmem [shape: bf16[512,8], index: 0, kind: input, shape index: {}]
  %s1 = inlined_call_operand.vmem [shape: bf16[8,8], index: 1, kind: input, shape index: {}]
  %s2 = inlined_call_operand.vmem [shape: f32[1,8], index: 2, kind: input, shape index: {}]
  %s3 = inlined_call_operand.vmem [shape: f32[1,8], index: 3, kind: input, shape index: {}]
  %s4 = inlined_call_operand.vmem [shape: bf16[8,16], index: 4, kind: input, shape index: {}]
  %s5 = inlined_call_operand.vmem [shape: f32[1,16], index: 5, kind: input, shape index: {}]
  %s6 = inlined_call_operand.vmem [shape: f32[1,16], index: 6, kind: input, shape index: {}]
  %s7 = inlined_call_operand.vmem [shape: bf16[512,8], index: 7, kind: output, shape index: {0}]
  %s8 = inlined_call_operand.vmem [shape: f32[512,16], index: 8, kind: output, shape index: {1}]
  %9 = xla_tuple %s7, %s8
  %s10 = sld [smem:[#allocation0]]
  $region69: #{strider_block_forward.2} parent=0
    _
  %s12 = ssub.s32 1, %s10
  %s13 = scalar_select 0, %s12, %s10
  loop: start=0, step=1, limit=6
  $region2: #{strider_block_forward.2} parent=0 // loop_pre_header
    _
  $region3: #{strider_block_forward.2} parent=0 // loop_header
    %s15 = sphi 0, %s19
    %p16 = scmp.ge.s32.totalorder %s15, 6
    %s25 = sphi 0, %s27
    %s28 = sphi 0, %s25
    %s29 = sphi 0, %s28
    %s45 = sphi 0, %s29
    %s49 = sphi 0, %s49
    %s51 = sphi 0, %s49
    %s52 = sphi 0, %s51
    %s66 = sphi 0, %s52
    %s70 = sphi 0, %s70
    %s72 = sphi 0, %s70
    %s73 = sphi 0, %s72
    %s87 = sphi 0, %s73
    %s91 = sphi 0, %s91
    %s93 = sphi 0, %s91
    %s94 = sphi 0, %s93
    %s108 = sphi 0, %s94
    %s112 = sphi 0, %s112
    %s114 = sphi 0, %s112
    %s115 = sphi 0, %s114
    %s129 = sphi 0, %s115
    %s133 = sphi 0, %s133
    %s135 = sphi 0, %s133
    %s136 = sphi 0, %s135
    %s150 = sphi 0, %s136
    %s154 = sphi 0, %s154
    %s156 = sphi 0, %s154
    %s157 = sphi 0, %s156
    %s171 = sphi 0, %s157
    %s177 = sphi 0, %s179
    %s180 = sphi 0, %s177
    %s181 = sphi 0, %s180
    %s197 = sphi 0, %s181
    %s203 = sphi 0, %s205
    %s206 = sphi 0, %s203
    %s207 = sphi 0, %s206
    %s223 = sphi 0, %s207
  $region4: #{strider_block_forward.2} parent=0 // loop_header_branch
    %18 = sbr.rel (%p16) target = $region8
  $region5: #{strider_block_forward.2} parent=0 // loop_body
    %s20 = ssub.s32 %s15, 1
    %s21 = ssub.s32 %s15, 2
    %s22 = sadd.s32 %s15, 1
    %s23 = ssub.s32 %s15, %s22
    %p24 = scmp.eq.s32.totalorder %s23, 0
    %s26 = sadd.s32 %s25, 1
    %s27 = scalar_select %p24, %s25, %s26
    %p30 = pneg %p24
    %p31 = scmp.eq.s32.totalorder %s15, 3
    %p32 = por %p30, %p31
    %p33 = scmp.ne.s32.totalorder %s25, %s28
    %p34 = scmp.eq.s32.totalorder %s15, 0
    %p35 = por %p33, %p34
    %p36 = scmp.ne.s32.totalorder %s25, %s28
    %p37 = scmp.eq.s32.totalorder %s20, 3
    %p38 = por %p36, %p37
    %p39 = scmp.ne.s32.totalorder %s28, %s29
    %p40 = scmp.eq.s32.totalorder %s20, 0
    %p41 = por %p39, %p40
    %p42 = scmp.ne.s32.totalorder %s28, %s29
    %p43 = scmp.eq.s32.totalorder %s21, 3
    %p44 = por %p42, %p43
    %p46 = scmp.ne.s32.totalorder %s29, %s45
    %p47 = scmp.eq.s32.totalorder %s21, 0
    %p48 = por %p46, %p47
    %s50 = sadd.s32 %s49, 1
    %p53 = scmp.eq.s32.totalorder %s15, 3
    %p54 = scmp.ne.s32.totalorder %s49, %s51
    %p55 = scmp.eq.s32.totalorder %s15, 0
    %p56 = por %p54, %p55
    %p57 = scmp.ne.s32.totalorder %s49, %s51
    %p58 = scmp.eq.s32.totalorder %s20, 3
    %p59 = por %p57, %p58
    %p60 = scmp.ne.s32.totalorder %s51, %s52
    %p61 = scmp.eq.s32.totalorder %s20, 0
    %p62 = por %p60, %p61
    %p63 = scmp.ne.s32.totalorder %s51, %s52
    %p64 = scmp.eq.s32.totalorder %s21, 3
    %p65 = por %p63, %p64
    %p67 = scmp.ne.s32.totalorder %s52, %s66
    %p68 = scmp.eq.s32.totalorder %s21, 0
    %p69 = por %p67, %p68
    %s71 = sadd.s32 %s70, 1
    %p74 = scmp.eq.s32.totalorder %s15, 3
    %p75 = scmp.ne.s32.totalorder %s70, %s72
    %p76 = scmp.eq.s32.totalorder %s15, 0
    %p77 = por %p75, %p76
    %p78 = scmp.ne.s32.totalorder %s70, %s72
    %p79 = scmp.eq.s32.totalorder %s20, 3
    %p80 = por %p78, %p79
    %p81 = scmp.ne.s32.totalorder %s72, %s73
    %p82 = scmp.eq.s32.totalorder %s20, 0
    %p83 = por %p81, %p82
    %p84 = scmp.ne.s32.totalorder %s72, %s73
    %p85 = scmp.eq.s32.totalorder %s21, 3
    %p86 = por %p84, %p85
    %p88 = scmp.ne.s32.totalorder %s73, %s87
    %p89 = scmp.eq.s32.totalorder %s21, 0
    %p90 = por %p88, %p89
    %s92 = sadd.s32 %s91, 1
    %p95 = scmp.eq.s32.totalorder %s15, 3
    %p96 = scmp.ne.s32.totalorder %s91, %s93
    %p97 = scmp.eq.s32.totalorder %s15, 0
    %p98 = por %p96, %p97
    %p99 = scmp.ne.s32.totalorder %s91, %s93
    %p100 = scmp.eq.s32.totalorder %s20, 3
    %p101 = por %p99, %p100
    %p102 = scmp.ne.s32.totalorder %s93, %s94
    %p103 = scmp.eq.s32.totalorder %s20, 0
    %p104 = por %p102, %p103
    %p105 = scmp.ne.s32.totalorder %s93, %s94
    %p106 = scmp.eq.s32.totalorder %s21, 3
    %p107 = por %p105, %p106
    %p109 = scmp.ne.s32.totalorder %s94, %s108
    %p110 = scmp.eq.s32.totalorder %s21, 0
    %p111 = por %p109, %p110
    %s113 = sadd.s32 %s112, 1
    %p116 = scmp.eq.s32.totalorder %s15, 3
    %p117 = scmp.ne.s32.totalorder %s112, %s114
    %p118 = scmp.eq.s32.totalorder %s15, 0
    %p119 = por %p117, %p118
    %p120 = scmp.ne.s32.totalorder %s112, %s114
    %p121 = scmp.eq.s32.totalorder %s20, 3
    %p122 = por %p120, %p121
    %p123 = scmp.ne.s32.totalorder %s114, %s115
    %p124 = scmp.eq.s32.totalorder %s20, 0
    %p125 = por %p123, %p124
    %p126 = scmp.ne.s32.totalorder %s114, %s115
    %p127 = scmp.eq.s32.totalorder %s21, 3
    %p128 = por %p126, %p127
    %p130 = scmp.ne.s32.totalorder %s115, %s129
    %p131 = scmp.eq.s32.totalorder %s21, 0
    %p132 = por %p130, %p131
    %s134 = sadd.s32 %s133, 1
    %p137 = scmp.eq.s32.totalorder %s15, 3
    %p138 = scmp.ne.s32.totalorder %s133, %s135
    %p139 = scmp.eq.s32.totalorder %s15, 0
    %p140 = por %p138, %p139
    %p141 = scmp.ne.s32.totalorder %s133, %s135
    %p142 = scmp.eq.s32.totalorder %s20, 3
    %p143 = por %p141, %p142
    %p144 = scmp.ne.s32.totalorder %s135, %s136
    %p145 = scmp.eq.s32.totalorder %s20, 0
    %p146 = por %p144, %p145
    %p147 = scmp.ne.s32.totalorder %s135, %s136
    %p148 = scmp.eq.s32.totalorder %s21, 3
    %p149 = por %p147, %p148
    %p151 = scmp.ne.s32.totalorder %s136, %s150
    %p152 = scmp.eq.s32.totalorder %s21, 0
    %p153 = por %p151, %p152
    %s155 = sadd.s32 %s154, 1
    %p158 = scmp.eq.s32.totalorder %s15, 3
    %p159 = scmp.ne.s32.totalorder %s154, %s156
    %p160 = scmp.eq.s32.totalorder %s15, 0
    %p161 = por %p159, %p160
    %p162 = scmp.ne.s32.totalorder %s154, %s156
    %p163 = scmp.eq.s32.totalorder %s20, 3
    %p164 = por %p162, %p163
    %p165 = scmp.ne.s32.totalorder %s156, %s157
    %p166 = scmp.eq.s32.totalorder %s20, 0
    %p167 = por %p165, %p166
    %p168 = scmp.ne.s32.totalorder %s156, %s157
    %p169 = scmp.eq.s32.totalorder %s21, 3
    %p170 = por %p168, %p169
    %p172 = scmp.ne.s32.totalorder %s157, %s171
    %p173 = scmp.eq.s32.totalorder %s21, 0
    %p174 = por %p172, %p173
    %s175 = ssub.s32 %s15, %s22
    %p176 = scmp.eq.s32.totalorder %s175, 0
    %s178 = sadd.s32 %s177, 1
    %s179 = scalar_select %p176, %s177, %s178
    %p182 = pneg %p176
    %p183 = scmp.eq.s32.totalorder %s15, 3
    %p184 = por %p182, %p183
    %p185 = scmp.ne.s32.totalorder %s177, %s180
    %p186 = scmp.eq.s32.totalorder %s15, 0
    %p187 = por %p185, %p186
    %p188 = scmp.ne.s32.totalorder %s177, %s180
    %p189 = scmp.eq.s32.totalorder %s20, 3
    %p190 = por %p188, %p189
    %p191 = scmp.ne.s32.totalorder %s180, %s181
    %p192 = scmp.eq.s32.totalorder %s20, 0
    %p193 = por %p191, %p192
    %p194 = scmp.ne.s32.totalorder %s180, %s181
    %p195 = scmp.eq.s32.totalorder %s21, 3
    %p196 = por %p194, %p195
    %p198 = scmp.ne.s32.totalorder %s181, %s197
    %p199 = scmp.eq.s32.totalorder %s21, 0
    %p200 = por %p198, %p199
    %s201 = ssub.s32 %s15, %s22
    %p202 = scmp.eq.s32.totalorder %s201, 0
    %s204 = sadd.s32 %s203, 1
    %s205 = scalar_select %p202, %s203, %s204
    %p208 = pneg %p202
    %p209 = scmp.eq.s32.totalorder %s15, 3
    %p210 = por %p208, %p209
    %p211 = scmp.ne.s32.totalorder %s203, %s206
    %p212 = scmp.eq.s32.totalorder %s15, 0
    %p213 = por %p211, %p212
    %p214 = scmp.ne.s32.totalorder %s203, %s206
    %p215 = scmp.eq.s32.totalorder %s20, 3
    %p216 = por %p214, %p215
    %p217 = scmp.ne.s32.totalorder %s206, %s207
    %p218 = scmp.eq.s32.totalorder %s20, 0
    %p219 = por %p217, %p218
    %p220 = scmp.ne.s32.totalorder %s206, %s207
    %p221 = scmp.eq.s32.totalorder %s21, 3
    %p222 = por %p220, %p221
    %p224 = scmp.ne.s32.totalorder %s207, %s223
    %p225 = scmp.eq.s32.totalorder %s21, 0
    %p226 = por %p224, %p225
    %p227 = scmp.le.s32.totalorder 1, %s15
    %p228 = scmp.lt.s32.totalorder %s15, 5
    %p229 = pnand %p227, %p228
    %p230 = pneg %p229
    // Predicated region
    $region9: #{strider_block_forward.2} parent=5 // pred_check
      _
    $region10: #{strider_block_forward.2} parent=5 // pred_check_branch
      %232 = sbr.rel (%p229) target = $region12
    $region11: #{strider_block_forward.2} parent=5 // pred_region
      %s233 = ssub.s32 %s15, 1
      // Predicated region
      $region13: #{strider_block_forward.2} parent=11 // pred_check
        %p234 = pneg %p62
      $region14: #{strider_block_forward.2} parent=11 // pred_check_branch
        %236 = sbr.rel (%p234) target = $region16
      $region15: #{strider_block_forward.2} parent=11 // pred_region
        _
      $region16: #{strider_block_forward.2} parent=11 // pred_fallthru
        _
      // Predicated region
      $region17: #{strider_block_forward.2} parent=11 // pred_check
        %p237 = pneg %p83
      $region18: #{strider_block_forward.2} parent=11 // pred_check_branch
        %239 = sbr.rel (%p237) target = $region20
      $region19: #{strider_block_forward.2} parent=11 // pred_region
        _
      $region20: #{strider_block_forward.2} parent=11 // pred_fallthru
        _
      // Predicated region
      $region21: #{strider_block_forward.2} parent=11 // pred_check
        %p240 = pneg %p104
      $region22: #{strider_block_forward.2} parent=11 // pred_check_branch
        %242 = sbr.rel (%p240) target = $region24
      $region23: #{strider_block_forward.2} parent=11 // pred_region
        _
      $region24: #{strider_block_forward.2} parent=11 // pred_fallthru
        _
      // Predicated region
      $region25: #{strider_block_forward.2} parent=11 // pred_check
        %p243 = pneg %p125
      $region26: #{strider_block_forward.2} parent=11 // pred_check_branch
        %245 = sbr.rel (%p243) target = $region28
      $region27: #{strider_block_forward.2} parent=11 // pred_region
        _
      $region28: #{strider_block_forward.2} parent=11 // pred_fallthru
        _
      // Predicated region
      $region29: #{strider_block_forward.2} parent=11 // pred_check
        %p246 = pneg %p146
      $region30: #{strider_block_forward.2} parent=11 // pred_check_branch
        %248 = sbr.rel (%p246) target = $region32
      $region31: #{strider_block_forward.2} parent=11 // pred_region
        _
      $region32: #{strider_block_forward.2} parent=11 // pred_fallthru
        _
      // Predicated region
      $region33: #{strider_block_forward.2} parent=11 // pred_check
        %p249 = pneg %p167
      $region34: #{strider_block_forward.2} parent=11 // pred_check_branch
        %251 = sbr.rel (%p249) target = $region36
      $region35: #{strider_block_forward.2} parent=11 // pred_region
        _
      $region36: #{strider_block_forward.2} parent=11 // pred_fallthru
        _
    $region12: #{strider_block_forward.2} parent=5 // pred_fallthru
      _
    %p252 = scmp.lt.s32.totalorder %s15, 4
    // Predicated region
    $region37: #{strider_block_forward.2} parent=5 // pred_check
      %p253 = pneg %p252
    $region38: #{strider_block_forward.2} parent=5 // pred_check_branch
      %255 = sbr.rel (%p253) target = $region40
    $region39: #{strider_block_forward.2} parent=5 // pred_region
      // Predicated region
      $region41: #{strider_block_forward.2} parent=39 // pred_check
        %p256 = pneg %p35
      $region42: #{strider_block_forward.2} parent=39 // pred_check_branch
        %258 = sbr.rel (%p256) target = $region44
      $region43: #{strider_block_forward.2} parent=39 // pred_region
        %s259 = smul.u32 16, %s15
        %p260 = scmp.lt.s32.totalorder %s259, 63
        %s261 = scalar_select %p260, %s259, 63
        %s262 = smul.addr %s261, 4
        %s263 = scalar_lea.vmem %s0, %s262
        %s264 = smul.u32 16, %s15
      $region44: #{strider_block_forward.2} parent=39 // pred_fallthru
        _
    $region40: #{strider_block_forward.2} parent=5 // pred_fallthru
      _
    %p265 = scmp.le.s32.totalorder 1, %s15
    %p266 = scmp.lt.s32.totalorder %s15, 5
    %p267 = pnand %p265, %p266
    %p268 = pneg %p267
    // Predicated region
    $region45: #{strider_block_forward.2} parent=5 // pred_check
      _
    $region46: #{strider_block_forward.2} parent=5 // pred_check_branch
      %270 = sbr.rel (%p267) target = $region48
    $region47: #{strider_block_forward.2} parent=5 // pred_region
      %s271 = ssub.s32 %s15, 1
      %s272 = smul.u32 16, %s20
      %p273 = scmp.lt.s32.totalorder %s272, 63
      %s274 = scalar_select %p273, %s272, 63
      %s275 = smul.addr %s274, 4
      %s276 = scalar_lea.vmem %s0, %s275
      %p277 = pneg %p41
      %p278 = pneg %p38
      %p279 = pneg %p62
      %p280 = pneg %p59
      %p281 = pneg %p83
      %p282 = pneg %p80
      %p283 = pneg %p104
      %p284 = pneg %p101
      %p285 = pneg %p125
      %p286 = pneg %p122
      %p287 = pneg %p146
      %p288 = pneg %p143
      %p289 = pneg %p167
      %p290 = pneg %p164
      %p291 = pneg %p193
      %p292 = pneg %p190
      %s293 = smul.u32 16, %s20
      %p294 = scmp.lt.s32.totalorder %s293, 63
      %s295 = scalar_select %p294, %s293, 63
      %s296 = smul.addr %s295, 4
      %s297 = scalar_lea.vmem %s7, %s296
      %p298 = pneg %p219
      %p299 = pneg %p216
      %s300 = smul.u32 16, %s20
      %p301 = scmp.lt.s32.totalorder %s300, 63
      %s302 = scalar_select %p301, %s300, 63
      %s303 = smul.addr %s302, 8
      %s304 = scalar_lea.vmem %s8, %s303
      %s305 = smul.u32 16, %s20
      %p306 = scmp.lt.s32.totalorder %s305, 63
      %s307 = scalar_select %p306, %s305, 63
      %s308 = smul.addr %s307, 4
      %s309 = scalar_lea.vmem %s0, %s308
      %s310 = smul.u32 16, %s20
      %s311 = smul.u32 16, %s20
      %p312 = scmp.lt.s32.totalorder %s311, 63
      %s313 = scalar_select %p312, %s311, 63
      %s314 = smul.addr %s313, 4
      %s315 = scalar_lea.vmem %s7, %s314
      %s316 = smul.u32 16, %s20
      %s317 = smul.u32 16, %s20
      %p318 = scmp.lt.s32.totalorder %s317, 63
      %s319 = scalar_select %p318, %s317, 63
      %s320 = smul.addr %s319, 8
      %s321 = scalar_lea.vmem %s8, %s320
      %s322 = smul.u32 16, %s20
      %v324 = vld [vmem:[%s309] sm:$0xf]
      %v325 = vld [vmem:[%s309 + $0x4] sm:$0xf]
      %v326 = vld [vmem:[%s309 + $0x8] sm:$0xf]
      %v327 = vld [vmem:[%s309 + $0xc] sm:$0xf]
      %v328 = vld [vmem:[%s309 + $0x10] sm:$0xf]
      %v329 = vld [vmem:[%s309 + $0x14] sm:$0xf]
      %v330 = vld [vmem:[%s309 + $0x18] sm:$0xf]
      %v331 = vld [vmem:[%s309 + $0x1c] sm:$0xf]
      %v332 = vld [vmem:[%s309 + $0x20] sm:$0xf]
      %v333 = vld [vmem:[%s309 + $0x24] sm:$0xf]
      %v334 = vld [vmem:[%s309 + $0x28] sm:$0xf]
      %v335 = vld [vmem:[%s309 + $0x2c] sm:$0xf]
      %v336 = vld [vmem:[%s309 + $0x30] sm:$0xf]
      %v337 = vld [vmem:[%s309 + $0x34] sm:$0xf]
      %v338 = vld [vmem:[%s309 + $0x38] sm:$0xf]
      %v339 = vld [vmem:[%s309 + $0x3c] sm:$0xf]
      %v340 = vld [vmem:[%s1] sm:$0xf]
      %v357 = vunpack.c.l.b16 %v324
      %v358 = vunpack.c.l.b16 %v325
      %v359 = vunpack.c.l.b16 %v326
      %v360 = vunpack.c.l.b16 %v327
      %v361 = vunpack.c.l.b16 %v328
      %v362 = vunpack.c.l.b16 %v329
      %v363 = vunpack.c.l.b16 %v330
      %v364 = vunpack.c.l.b16 %v331
      %v365 = vunpack.c.l.b16 %v332
      %v366 = vunpack.c.l.b16 %v333
      %v367 = vunpack.c.l.b16 %v334
      %v368 = vunpack.c.l.b16 %v335
      %v369 = vunpack.c.l.b16 %v336
      %v370 = vunpack.c.l.b16 %v337
      %v371 = vunpack.c.l.b16 %v338
      %v372 = vunpack.c.l.b16 %v339
      %v373 = vpack.c.b16 %v358, %v357
      %v374 = vpack.c.b16 %v360, %v359
      %v375 = vpack.c.b16 %v362, %v361
      %v376 = vpack.c.b16 %v364, %v363
      %v377 = vpack.c.b16 %v366, %v365
      %v378 = vpack.c.b16 %v368, %v367
      %v379 = vpack.c.b16 %v370, %v369
      %v380 = vpack.c.b16 %v372, %v371
      %vm381 = vcmask 64512
      %v383 = vsel %vm381, %v373, 0
      %v386 = vsel %vm381, %v374, 0
      %v389 = vsel %vm381, %v375, 0
      %v392 = vsel %vm381, %v376, 0
      %v395 = vsel %vm381, %v377, 0
      %v398 = vsel %vm381, %v378, 0
      %v401 = vsel %vm381, %v379, 0
      %v404 = vsel %vm381, %v380, 0
      %vm406 = vcmask 1043456
      %v408 = vsel %vm406, %v340, 0
      %410 = vmatprep.subr.bf16.mxu0 0
      %411 = vmatpush1.bf16.msra.mxu0 %v408
      %412 = vmatprep.subr.bf16.mxu0 0
      %413 = vmatpush1.bf16.msra.mxu0 0
      %414 = vmatprep.subr.bf16.mxu0 0
      %415 = vmatpush1.bf16.msra.mxu0 0
      %416 = vmatprep.subr.bf16.mxu0 0
      %417 = vmatpush1.bf16.msra.mxu0 0
      %418 = vmatprep.subr.bf16.mxu0 0
      %419 = vmatpush1.bf16.msra.mxu0 0
      %420 = vmatprep.subr.bf16.mxu0 0
      %421 = vmatpush1.bf16.msra.mxu0 0
      %422 = vmatprep.subr.bf16.mxu0 0
      %423 = vmatpush1.bf16.msra.mxu0 0
      %424 = vmatprep.subr.bf16.mxu0 0
      %425 = vmatpush1.bf16.msra.mxu0 0
      %426 = vmatprep.subr.bf16.mxu0 0
      %427 = vmatpush1.bf16.msra.mxu0 0
      %428 = vmatprep.subr.bf16.mxu0 0
      %429 = vmatpush1.bf16.msra.mxu0 0
      %430 = vmatprep.subr.bf16.mxu0 0
      %431 = vmatpush1.bf16.msra.mxu0 0
      %432 = vmatprep.subr.bf16.mxu0 0
      %433 = vmatpush1.bf16.msra.mxu0 0
      %434 = vmatprep.subr.bf16.mxu0 0
      %435 = vmatpush1.bf16.msra.mxu0 0
      %436 = vmatprep.subr.bf16.mxu0 0
      %437 = vmatpush1.bf16.msra.mxu0 0
      %438 = vmatprep.subr.bf16.mxu0 0
      %439 = vmatpush1.bf16.msra.mxu0 0
      %440 = vmatprep.subr.bf16.mxu0 0
      %441 = vmatpush1.bf16.msra.mxu0 0
      %442 = vmatprep.mubr.bf16.mxu0 0
      %443 = vmatmul.mubr.bf16.gmra.mrb[0].mxu0 %v383
      %v444 = vpop.f32.mrb[0].mxu0
      %v445 = vadd.f32 0.0, %v444
      %v446 = vpop.f32.mrb[0].mxu0
      %v447 = vpop.f32.mrb[0].mxu0
      %v448 = vadd.f32 0.0, %v447
      %v449 = vpop.f32.mrb[0].mxu0
      %450 = vmatprep.mubr.bf16.mxu0 0
      %451 = vmatmul.mubr.bf16.gmra.mrb[0].mxu0 %v386
      %v452 = vpop.f32.mrb[0].mxu0
      %v453 = vadd.f32 0.0, %v452
      %v454 = vpop.f32.mrb[0].mxu0
      %v455 = vpop.f32.mrb[0].mxu0
      %v456 = vadd.f32 0.0, %v455
      %v457 = vpop.f32.mrb[0].mxu0
      %458 = vmatprep.mubr.bf16.mxu0 0
      %459 = vmatmul.mubr.bf16.gmra.mrb[0].mxu0 %v389
      %v460 = vpop.f32.mrb[0].mxu0
      %v461 = vadd.f32 0.0, %v460
      %v462 = vpop.f32.mrb[0].mxu0
      %v463 = vpop.f32.mrb[0].mxu0
      %v464 = vadd.f32 0.0, %v463
      %v465 = vpop.f32.mrb[0].mxu0
      %466 = vmatprep.mubr.bf16.mxu0 0
      %467 = vmatmul.mubr.bf16.gmra.mrb[0].mxu0 %v392
      %v468 = vpop.f32.mrb[0].mxu0
      %v469 = vadd.f32 0.0, %v468
      %v470 = vpop.f32.mrb[0].mxu0
      %v471 = vpop.f32.mrb[0].mxu0
      %v472 = vadd.f32 0.0, %v471
      %v473 = vpop.f32.mrb[0].mxu0
      %474 = vmatprep.mubr.bf16.mxu0 0
      %475 = vmatmul.mubr.bf16.gmra.mrb[0].mxu0 %v395
      %v476 = vpop.f32.mrb[0].mxu0
      %v477 = vadd.f32 0.0, %v476
      %v478 = vpop.f32.mrb[0].mxu0
      %v479 = vpop.f32.mrb[0].mxu0
      %v480 = vadd.f32 0.0, %v479
      %v481 = vpop.f32.mrb[0].mxu0
      %482 = vmatprep.mubr.bf16.mxu0 0
      %483 = vmatmul.mubr.bf16.gmra.mrb[0].mxu0 %v398
      %v484 = vpop.f32.mrb[0].mxu0
      %v485 = vadd.f32 0.0, %v484
      %v486 = vpop.f32.mrb[0].mxu0
      %v487 = vpop.f32.mrb[0].mxu0
      %v488 = vadd.f32 0.0, %v487
      %v489 = vpop.f32.mrb[0].mxu0
      %490 = vmatprep.mubr.bf16.mxu0 0
      %491 = vmatmul.mubr.bf16.gmra.mrb[0].mxu0 %v401
      %v492 = vpop.f32.mrb[0].mxu0
      %v493 = vadd.f32 0.0, %v492
      %v494 = vpop.f32.mrb[0].mxu0
      %v495 = vpop.f32.mrb[0].mxu0
      %v496 = vadd.f32 0.0, %v495
      %v497 = vpop.f32.mrb[0].mxu0
      %498 = vmatprep.mubr.bf16.mxu0 0
      %499 = vmatmul.mubr.bf16.gmra.mrb[0].mxu0 %v404
      %v500 = vpop.f32.mrb[0].mxu0
      %v501 = vadd.f32 0.0, %v500
      %v502 = vpop.f32.mrb[0].mxu0
      %v503 = vpop.f32.mrb[0].mxu0
      %v504 = vadd.f32 0.0, %v503
      %v505 = vpop.f32.mrb[0].mxu0
      %506 = vdwg.mxu0
      %v507 = vld [vmem:[%s2] sm:$0x1]
      %v509 = vlaneseq
      %v510 = vshrl.u32 %v509, 7
      %v511 = vsub.s32 0, %v510
      %v512 = vrot.slane %v507, %v511
      %v514 = vmul.f32 %v445, %v512
      %v515 = vmul.f32 %v448, %v512
      %v516 = vmul.f32 %v453, %v512
      %v517 = vmul.f32 %v456, %v512
      %v518 = vmul.f32 %v461, %v512
      %v519 = vmul.f32 %v464, %v512
      %v520 = vmul.f32 %v469, %v512
      %v521 = vmul.f32 %v472, %v512
      %v522 = vmul.f32 %v477, %v512
      %v523 = vmul.f32 %v480, %v512
      %v524 = vmul.f32 %v485, %v512
      %v525 = vmul.f32 %v488, %v512
      %v526 = vmul.f32 %v493, %v512
      %v527 = vmul.f32 %v496, %v512
      %v528 = vmul.f32 %v501, %v512
      %v529 = vmul.f32 %v504, %v512
      %v530 = vld [vmem:[%s3] sm:$0x1]
      %v532 = vlaneseq
      %v533 = vshrl.u32 %v532, 7
      %v534 = vsub.s32 0, %v533
      %v535 = vrot.slane %v530, %v534
      %v537 = vadd.f32 %v514, %v535
      %v538 = vadd.f32 %v515, %v535
      %v539 = vadd.f32 %v516, %v535
      %v540 = vadd.f32 %v517, %v535
      %v541 = vadd.f32 %v518, %v535
      %v542 = vadd.f32 %v519, %v535
      %v543 = vadd.f32 %v520, %v535
      %v544 = vadd.f32 %v521, %v535
      %v545 = vadd.f32 %v522, %v535
      %v546 = vadd.f32 %v523, %v535
      %v547 = vadd.f32 %v524, %v535
      %v548 = vadd.f32 %v525, %v535
      %v549 = vadd.f32 %v526, %v535
      %v550 = vadd.f32 %v527, %v535
      %v551 = vadd.f32 %v528, %v535
      %v552 = vadd.f32 %v529, %v535
      %v553 = vmax.f32 %v537, 0.0
      %v554 = vmax.f32 %v538, 0.0
      %v555 = vmax.f32 %v539, 0.0
      %v556 = vmax.f32 %v540, 0.0
      %v557 = vmax.f32 %v541, 0.0
      %v558 = vmax.f32 %v542, 0.0
      %v559 = vmax.f32 %v543, 0.0
      %v560 = vmax.f32 %v544, 0.0
      %v561 = vmax.f32 %v545, 0.0
      %v562 = vmax.f32 %v546, 0.0
      %v563 = vmax.f32 %v547, 0.0
      %v564 = vmax.f32 %v548, 0.0
      %v565 = vmax.f32 %v549, 0.0
      %v566 = vmax.f32 %v550, 0.0
      %v567 = vmax.f32 %v551, 0.0
      %v568 = vmax.f32 %v552, 0.0
      %v569 = vpack.c.bf16 %v554, %v553
      %v570 = vpack.c.bf16 %v556, %v555
      %v571 = vpack.c.bf16 %v558, %v557
      %v572 = vpack.c.bf16 %v560, %v559
      %v573 = vpack.c.bf16 %v562, %v561
      %v574 = vpack.c.bf16 %v564, %v563
      %v575 = vpack.c.bf16 %v566, %v565
      %v576 = vpack.c.bf16 %v568, %v567
      %v585 = vunpack.c.l.b16 %v569
      %v586 = vunpack.c.h.b16 %v569
      %v587 = vunpack.c.l.b16 %v570
      %v588 = vunpack.c.h.b16 %v570
      %v589 = vunpack.c.l.b16 %v571
      %v590 = vunpack.c.h.b16 %v571
      %v591 = vunpack.c.l.b16 %v572
      %v592 = vunpack.c.h.b16 %v572
      %v593 = vunpack.c.l.b16 %v573
      %v594 = vunpack.c.h.b16 %v573
      %v595 = vunpack.c.l.b16 %v574
      %v596 = vunpack.c.h.b16 %v574
      %v597 = vunpack.c.l.b16 %v575
      %v598 = vunpack.c.h.b16 %v575
      %v599 = vunpack.c.l.b16 %v576
      %v600 = vunpack.c.h.b16 %v576
      %v601 = vpack.c.b16 %v585, %v585
      %v602 = vpack.c.b16 %v586, %v586
      %v603 = vpack.c.b16 %v587, %v587
      %v604 = vpack.c.b16 %v588, %v588
      %v605 = vpack.c.b16 %v589, %v589
      %v606 = vpack.c.b16 %v590, %v590
      %v607 = vpack.c.b16 %v591, %v591
      %v608 = vpack.c.b16 %v592, %v592
      %v609 = vpack.c.b16 %v593, %v593
      %v610 = vpack.c.b16 %v594, %v594
      %v611 = vpack.c.b16 %v595, %v595
      %v612 = vpack.c.b16 %v596, %v596
      %v613 = vpack.c.b16 %v597, %v597
      %v614 = vpack.c.b16 %v598, %v598
      %v615 = vpack.c.b16 %v599, %v599
      %v616 = vpack.c.b16 %v600, %v600
      %vm633 = vcmask 60416
      %634 = vst.msk [vmem:[%s315] sm:$0xf] %vm633, %v601
      %635 = vst.msk [vmem:[%s315 + $0x4] sm:$0xf] %vm633, %v602
      %636 = vst.msk [vmem:[%s315 + $0x8] sm:$0xf] %vm633, %v603
      %637 = vst.msk [vmem:[%s315 + $0xc] sm:$0xf] %vm633, %v604
      %638 = vst.msk [vmem:[%s315 + $0x10] sm:$0xf] %vm633, %v605
      %639 = vst.msk [vmem:[%s315 + $0x14] sm:$0xf] %vm633, %v606
      %640 = vst.msk [vmem:[%s315 + $0x18] sm:$0xf] %vm633, %v607
      %641 = vst.msk [vmem:[%s315 + $0x1c] sm:$0xf] %vm633, %v608
      %642 = vst.msk [vmem:[%s315 + $0x20] sm:$0xf] %vm633, %v609
      %643 = vst.msk [vmem:[%s315 + $0x24] sm:$0xf] %vm633, %v610
      %644 = vst.msk [vmem:[%s315 + $0x28] sm:$0xf] %vm633, %v611
      %645 = vst.msk [vmem:[%s315 + $0x2c] sm:$0xf] %vm633, %v612
      %646 = vst.msk [vmem:[%s315 + $0x30] sm:$0xf] %vm633, %v613
      %647 = vst.msk [vmem:[%s315 + $0x34] sm:$0xf] %vm633, %v614
      %648 = vst.msk [vmem:[%s315 + $0x38] sm:$0xf] %vm633, %v615
      %649 = vst.msk [vmem:[%s315 + $0x3c] sm:$0xf] %vm633, %v616
      %v650 = vld [vmem:[%s4] sm:$0xf]
      %v652 = vsel %vm406, %v650, 0
      %654 = vmatprep.subr.bf16.mxu0 0
      %655 = vmatpush1.bf16.msra.mxu0 %v652
      %656 = vmatprep.subr.bf16.mxu0 0
      %657 = vmatpush1.bf16.msra.mxu0 0
      %658 = vmatprep.subr.bf16.mxu0 0
      %659 = vmatpush1.bf16.msra.mxu0 0
      %660 = vmatprep.subr.bf16.mxu0 0
      %661 = vmatpush1.bf16.msra.mxu0 0
      %662 = vmatprep.subr.bf16.mxu0 0
      %663 = vmatpush1.bf16.msra.mxu0 0
      %664 = vmatprep.subr.bf16.mxu0 0
      %665 = vmatpush1.bf16.msra.mxu0 0
      %666 = vmatprep.subr.bf16.mxu0 0
      %667 = vmatpush1.bf16.msra.mxu0 0
      %668 = vmatprep.subr.bf16.mxu0 0
      %669 = vmatpush1.bf16.msra.mxu0 0
      %670 = vmatprep.subr.bf16.mxu0 0
      %671 = vmatpush1.bf16.msra.mxu0 0
      %672 = vmatprep.subr.bf16.mxu0 0
      %673 = vmatpush1.bf16.msra.mxu0 0
      %674 = vmatprep.subr.bf16.mxu0 0
      %675 = vmatpush1.bf16.msra.mxu0 0
      %676 = vmatprep.subr.bf16.mxu0 0
      %677 = vmatpush1.bf16.msra.mxu0 0
      %678 = vmatprep.subr.bf16.mxu0 0
      %679 = vmatpush1.bf16.msra.mxu0 0
      %680 = vmatprep.subr.bf16.mxu0 0
      %681 = vmatpush1.bf16.msra.mxu0 0
      %682 = vmatprep.subr.bf16.mxu0 0
      %683 = vmatpush1.bf16.msra.mxu0 0
      %684 = vmatprep.subr.bf16.mxu0 0
      %685 = vmatpush1.bf16.msra.mxu0 0
      %686 = vmatprep.mubr.bf16.mxu0 0
      %687 = vmatmul.mubr.bf16.gmra.mrb[0].mxu0 %v383
      %v688 = vpop.f32.mrb[0].mxu0
      %v689 = vadd.f32 0.0, %v688
      %v690 = vpop.f32.mrb[0].mxu0
      %v691 = vpop.f32.mrb[0].mxu0
      %v692 = vadd.f32 0.0, %v691
      %v693 = vpop.f32.mrb[0].mxu0
      %694 = vmatprep.mubr.bf16.mxu0 0
      %695 = vmatmul.mubr.bf16.gmra.mrb[0].mxu0 %v386
      %v696 = vpop.f32.mrb[0].mxu0
      %v697 = vadd.f32 0.0, %v696
      %v698 = vpop.f32.mrb[0].mxu0
      %v699 = vpop.f32.mrb[0].mxu0
      %v700 = vadd.f32 0.0, %v699
      %v701 = vpop.f32.mrb[0].mxu0
      %702 = vmatprep.mubr.bf16.mxu0 0
      %703 = vmatmul.mubr.bf16.gmra.mrb[0].mxu0 %v389
      %v704 = vpop.f32.mrb[0].mxu0
      %v705 = vadd.f32 0.0, %v704
      %v706 = vpop.f32.mrb[0].mxu0
      %v707 = vpop.f32.mrb[0].mxu0
      %v708 = vadd.f32 0.0, %v707
      %v709 = vpop.f32.mrb[0].mxu0
      %710 = vmatprep.mubr.bf16.mxu0 0
      %711 = vmatmul.mubr.bf16.gmra.mrb[0].mxu0 %v392
      %v712 = vpop.f32.mrb[0].mxu0
      %v713 = vadd.f32 0.0, %v712
      %v714 = vpop.f32.mrb[0].mxu0
      %v715 = vpop.f32.mrb[0].mxu0
      %v716 = vadd.f32 0.0, %v715
      %v717 = vpop.f32.mrb[0].mxu0
      %718 = vmatprep.mubr.bf16.mxu0 0
      %719 = vmatmul.mubr.bf16.gmra.mrb[0].mxu0 %v395
      %v720 = vpop.f32.mrb[0].mxu0
      %v721 = vadd.f32 0.0, %v720
      %v722 = vpop.f32.mrb[0].mxu0
      %v723 = vpop.f32.mrb[0].mxu0
      %v724 = vadd.f32 0.0, %v723
      %v725 = vpop.f32.mrb[0].mxu0
      %726 = vmatprep.mubr.bf16.mxu0 0
      %727 = vmatmul.mubr.bf16.gmra.mrb[0].mxu0 %v398
      %v728 = vpop.f32.mrb[0].mxu0
      %v729 = vadd.f32 0.0, %v728
      %v730 = vpop.f32.mrb[0].mxu0
      %v731 = vpop.f32.mrb[0].mxu0
      %v732 = vadd.f32 0.0, %v731
      %v733 = vpop.f32.mrb[0].mxu0
      %734 = vmatprep.mubr.bf16.mxu0 0
      %735 = vmatmul.mubr.bf16.gmra.mrb[0].mxu0 %v401
      %v736 = vpop.f32.mrb[0].mxu0
      %v737 = vadd.f32 0.0, %v736
      %v738 = vpop.f32.mrb[0].mxu0
      %v739 = vpop.f32.mrb[0].mxu0
      %v740 = vadd.f32 0.0, %v739
      %v741 = vpop.f32.mrb[0].mxu0
      %742 = vmatprep.mubr.bf16.mxu0 0
      %743 = vmatmul.mubr.bf16.gmra.mrb[0].mxu0 %v404
      %v744 = vpop.f32.mrb[0].mxu0
      %v745 = vadd.f32 0.0, %v744
      %v746 = vpop.f32.mrb[0].mxu0
      %v747 = vpop.f32.mrb[0].mxu0
      %v748 = vadd.f32 0.0, %v747
      %v749 = vpop.f32.mrb[0].mxu0
      %750 = vdwg.mxu0
      %v751 = vld [vmem:[%s5] sm:$0x1]
      %v753 = vlaneseq
      %v754 = vshrl.u32 %v753, 7
      %v755 = vsub.s32 0, %v754
      %v756 = vrot.slane %v751, %v755
      %v758 = vmul.f32 %v689, %v756
      %v759 = vmul.f32 %v692, %v756
      %v760 = vmul.f32 %v697, %v756
      %v761 = vmul.f32 %v700, %v756
      %v762 = vmul.f32 %v705, %v756
      %v763 = vmul.f32 %v708, %v756
      %v764 = vmul.f32 %v713, %v756
      %v765 = vmul.f32 %v716, %v756
      %v766 = vmul.f32 %v721, %v756
      %v767 = vmul.f32 %v724, %v756
      %v768 = vmul.f32 %v729, %v756
      %v769 = vmul.f32 %v732, %v756
      %v770 = vmul.f32 %v737, %v756
      %v771 = vmul.f32 %v740, %v756
      %v772 = vmul.f32 %v745, %v756
      %v773 = vmul.f32 %v748, %v756
      %v774 = vld [vmem:[%s6] sm:$0x1]
      %v776 = vlaneseq
      %v777 = vshrl.u32 %v776, 7
      %v778 = vsub.s32 0, %v777
      %v779 = vrot.slane %v774, %v778
      %v781 = vadd.f32 %v758, %v779
      %v782 = vadd.f32 %v759, %v779
      %v783 = vadd.f32 %v760, %v779
      %v784 = vadd.f32 %v761, %v779
      %v785 = vadd.f32 %v762, %v779
      %v786 = vadd.f32 %v763, %v779
      %v787 = vadd.f32 %v764, %v779
      %v788 = vadd.f32 %v765, %v779
      %v789 = vadd.f32 %v766, %v779
      %v790 = vadd.f32 %v767, %v779
      %v791 = vadd.f32 %v768, %v779
      %v792 = vadd.f32 %v769, %v779
      %v793 = vadd.f32 %v770, %v779
      %v794 = vadd.f32 %v771, %v779
      %v795 = vadd.f32 %v772, %v779
      %v796 = vadd.f32 %v773, %v779
      %vm797 = vcmask 130048
      %798 = vst.msk [vmem:[%s321] sm:$0xff] %vm797, %v781
      %799 = vst.msk [vmem:[%s321 + $0x8] sm:$0xff] %vm797, %v782
      %800 = vst.msk [vmem:[%s321 + $0x10] sm:$0xff] %vm797, %v783
      %801 = vst.msk [vmem:[%s321 + $0x18] sm:$0xff] %vm797, %v784
      %802 = vst.msk [vmem:[%s321 + $0x20] sm:$0xff] %vm797, %v785
      %803 = vst.msk [vmem:[%s321 + $0x28] sm:$0xff] %vm797, %v786
      %804 = vst.msk [vmem:[%s321 + $0x30] sm:$0xff] %vm797, %v787
      %805 = vst.msk [vmem:[%s321 + $0x38] sm:$0xff] %vm797, %v788
      %806 = vst.msk [vmem:[%s321 + $0x40] sm:$0xff] %vm797, %v789
      %807 = vst.msk [vmem:[%s321 + $0x48] sm:$0xff] %vm797, %v790
      %808 = vst.msk [vmem:[%s321 + $0x50] sm:$0xff] %vm797, %v791
      %809 = vst.msk [vmem:[%s321 + $0x58] sm:$0xff] %vm797, %v792
      %810 = vst.msk [vmem:[%s321 + $0x60] sm:$0xff] %vm797, %v793
      %811 = vst.msk [vmem:[%s321 + $0x68] sm:$0xff] %vm797, %v794
      %812 = vst.msk [vmem:[%s321 + $0x70] sm:$0xff] %vm797, %v795
      %813 = vst.msk [vmem:[%s321 + $0x78] sm:$0xff] %vm797, %v796
      %s814 = smul.u32 16, %s20
      %p815 = scmp.lt.s32.totalorder %s814, 63
      %s816 = scalar_select %p815, %s814, 63
      %s817 = smul.addr %s816, 4
      %s818 = scalar_lea.vmem %s7, %s817
      %s819 = smul.u32 16, %s20
      %p820 = scmp.lt.s32.totalorder %s819, 63
      %s821 = scalar_select %p820, %s819, 63
      %s822 = smul.addr %s821, 8
      %s823 = scalar_lea.vmem %s8, %s822
      // Predicated region
      $region49: #{strider_block_forward.2} parent=47 // pred_check
        %p824 = pneg %p190
      $region50: #{strider_block_forward.2} parent=47 // pred_check_branch
        %826 = sbr.rel (%p824) target = $region52
      $region51: #{strider_block_forward.2} parent=47 // pred_region
        %s827 = smul.u32 16, %s20
      $region52: #{strider_block_forward.2} parent=47 // pred_fallthru
        _
      // Predicated region
      $region53: #{strider_block_forward.2} parent=47 // pred_check
        %p828 = pneg %p216
      $region54: #{strider_block_forward.2} parent=47 // pred_check_branch
        %830 = sbr.rel (%p828) target = $region56
      $region55: #{strider_block_forward.2} parent=47 // pred_region
        %s831 = smul.u32 16, %s20
      $region56: #{strider_block_forward.2} parent=47 // pred_fallthru
        _
    $region48: #{strider_block_forward.2} parent=5 // pred_fallthru
      _
    %p832 = scmp.le.s32.totalorder 2, %s15
    // Predicated region
    $region57: #{strider_block_forward.2} parent=5 // pred_check
      %p833 = pneg %p832
    $region58: #{strider_block_forward.2} parent=5 // pred_check_branch
      %835 = sbr.rel (%p833) target = $region60
    $region59: #{strider_block_forward.2} parent=5 // pred_region
      %s836 = ssub.s32 %s15, 2
      // Predicated region
      $region61: #{strider_block_forward.2} parent=59 // pred_check
        %p837 = pneg %p196
      $region62: #{strider_block_forward.2} parent=59 // pred_check_branch
        %839 = sbr.rel (%p837) target = $region64
      $region63: #{strider_block_forward.2} parent=59 // pred_region
        %s840 = smul.u32 16, %s21
        %p841 = scmp.lt.s32.totalorder %s840, 63
        %s842 = scalar_select %p841, %s840, 63
        %s843 = smul.addr %s842, 4
        %s844 = scalar_lea.vmem %s7, %s843
      $region64: #{strider_block_forward.2} parent=59 // pred_fallthru
        _
      // Predicated region
      $region65: #{strider_block_forward.2} parent=59 // pred_check
        %p845 = pneg %p222
      $region66: #{strider_block_forward.2} parent=59 // pred_check_branch
        %847 = sbr.rel (%p845) target = $region68
      $region67: #{strider_block_forward.2} parent=59 // pred_region
        %s848 = smul.u32 16, %s21
        %p849 = scmp.lt.s32.totalorder %s848, 63
        %s850 = scalar_select %p849, %s848, 63
        %s851 = smul.addr %s850, 8
        %s852 = scalar_lea.vmem %s8, %s851
      $region68: #{strider_block_forward.2} parent=59 // pred_fallthru
        _
    $region60: #{strider_block_forward.2} parent=5 // pred_fallthru
      _
  $region6: #{strider_block_forward.2} parent=0 // loop_footer
    %s19 = sadd.s32 1, %s15
  $region7: #{strider_block_forward.2} parent=0 // loop_footer_branch
    %14 = sbr.rel target = $region3
  $region8: #{strider_block_forward.2} parent=0 // loop_exit
    _

</llo_original>
